<compile_context>
chip_gen: v5e
topology: v5e:2x2
jax: 0.10.0
libtpu: 0.0.40
codegen_flags: <defaults>
</compile_context>

<pallas_src>
import jax
import jax.numpy as jnp
from jax.experimental import pallas as pl
from jax.experimental.pallas import tpu as pltpu


def _round_up(x, m):
    return ((x + m - 1) // m) * m


def _default_relu_in_bf16():
    """bf16 VALU exists on v6e/v7x; keep elementwise math in f32 on v5 chips."""
    try:
        kind = jax.devices()[0].device_kind.lower()
    except Exception:
        return True
    return "v5" not in kind


def _make_kernel(relu_in_bf16):
    def kernel(x_ref,
               w1, b1, w2, b2, w3, b3, w4, b4, w5, b5,
               o_ref):
        """Fused 5-layer MLP on one (TM, D_in) row tile.

        Weights are bf16 (BN pre-folded); biases f32.  Matmuls accumulate in f32
        on the MXU; bias add in f32; ReLU in bf16 (v6e/v7x) or f32 (v5e);
        downcast to bf16 right before the next dot.  Final logits stored bf16.
        """

        def hidden_layer(h, w_ref, b_ref):
            z = jnp.dot(h, w_ref[...], preferred_element_type=jnp.float32) + b_ref[...]
            if relu_in_bf16:
                # relu commutes with the monotone, zero-preserving bf16 cast
                return jnp.maximum(z.astype(w_ref.dtype), 0)
            return jnp.maximum(z, 0.0).astype(w_ref.dtype)

        h = x_ref[...].astype(w1.dtype)          # f32 rows -> bf16 in-kernel
        h = hidden_layer(h, w1, b1)
        h = hidden_layer(h, w2, b2)
        h = hidden_layer(h, w3, b3)
        h = hidden_layer(h, w4, b4)
        # Final Linear, padded to 128 output lanes -> lane-dense unmasked stores.
        z = jnp.dot(h, w5[...], preferred_element_type=jnp.float32) + b5[...]
        o_ref[...] = z.astype(o_ref.dtype)

    return kernel


def mlp_forward(x, params, *, tm=None, relu_in_bf16=None):
    """x: (B, input_dim) f32.  params: flat list from init_mlp_params.

    Returns (B, 2) f32 logits.
    """
    w1 = params[0]
    w5 = params[8]
    B, D = x.shape
    assert D == w1.shape[0], (D, w1.shape)
    hidden = w1.shape[1]
    n_out_pad = w5.shape[1]

    if relu_in_bf16 is None:
        relu_in_bf16 = _default_relu_in_bf16()

    # Row tile: large to amortize per-grid-step overhead, multiple of 8; for big
    # batches keep >= 2 balanced steps so both v7x TensorCores get work.
    if tm is None:
        tm = min(1024, _round_up(B, 8))
        if B > 512:
            tm = min(tm, _round_up((B + 1) // 2, 8))
    tm = max(8, _round_up(tm, 8))
    b_pad = _round_up(B, tm)

    # Row-only pad (no feature pad, no dtype cast) and only when B % tm != 0.
    xp = x if b_pad == B else jnp.pad(x, ((0, b_pad - B), (0, 0)))

    grid = (b_pad // tm,)

    def build_specs(param_pipeline_mode):
        # x / out tiled over the batch grid; every parameter grid-invariant
        # (same block index each step -> stays resident in VMEM, no re-DMA).
        in_specs = [pl.BlockSpec((tm, D), lambda i: (i, 0))]
        for p in params:
            if param_pipeline_mode is None:
                in_specs.append(pl.BlockSpec(p.shape, lambda i: (0, 0)))
            else:
                in_specs.append(pl.BlockSpec(p.shape, lambda i: (0, 0),
                                             pipeline_mode=param_pipeline_mode))
        return in_specs

    param_bytes = sum(int(p.size) * p.dtype.itemsize for p in params)
    flops = 2 * b_pad * (D * hidden + 3 * hidden * hidden + hidden * n_out_pad)
    bytes_accessed = (int(xp.size) * xp.dtype.itemsize
                      + b_pad * n_out_pad * 2          # bf16 logits
                      + param_bytes)
    cost = pl.CostEstimate(flops=int(flops), transcendentals=0,
                           bytes_accessed=int(bytes_accessed))

    # Per-step VMEM: double-buffered x/out tiles + resident params + f32 intermediates.
    step_bytes = (2 * tm * D * xp.dtype.itemsize
                  + 2 * tm * n_out_pad * 2
                  + param_bytes
                  + 6 * tm * hidden * 4)
    vmem_limit = int(min(max(2 * step_bytes, 32 * 1024 * 1024), 64 * 1024 * 1024))

    def run(param_pipeline_mode):
        return pl.pallas_call(
            _make_kernel(relu_in_bf16),
            out_shape=jax.ShapeDtypeStruct((b_pad, n_out_pad), jnp.bfloat16),
            grid=grid,
            in_specs=build_specs(param_pipeline_mode),
            out_specs=pl.BlockSpec((tm, n_out_pad), lambda i: (i, 0)),
            compiler_params=pltpu.CompilerParams(
                dimension_semantics=("parallel",),
                vmem_limit_bytes=vmem_limit),
            cost_estimate=cost,
        )(xp, *params)

    try:
        # Grid-invariant params: single-buffered (saves VMEM + a prologue DMA pair).
        out = run(pl.Buffered(1))
    except Exception:
        # Conservative fallback if this lowering rejects Buffered(1) on params.
        out = run(None)

    return out[:B, :2].astype(jnp.float32)


def _xavier_uniform(key, fan_in, fan_out):
    bound = (6.0 / (fan_in + fan_out)) ** 0.5
    # PyTorch weight is [out, in]; we store the transpose [in, out].
    return jax.random.uniform(key, (fan_in, fan_out), jnp.float32, -bound, bound)


def init_mlp_params(key, input_dim, hidden_dim=256, n_classes=2, eps=1e-5,
                    compute_dtype=jnp.bfloat16, lane=128):
    """Init matching MLP._init_weights (Xavier weights, zero bias), with
    eval-mode BatchNorm1d (gamma=1, beta=0, running_mean=0, running_var=1)
    folded into the preceding Linear:
        w' = w * scale      (scale = gamma / sqrt(var + eps), per out-feature)
        b' = b * scale + (beta - mean * scale)
    Last-layer N is zero-padded to `lane` (128); first-layer K stays unpadded.
    """
    dims = [(input_dim, hidden_dim),
            (hidden_dim, hidden_dim),
            (hidden_dim, hidden_dim),
            (hidden_dim, hidden_dim),
            (hidden_dim, n_classes)]
    keys = jax.random.split(key, len(dims))
    n_out_pad = max(lane, _round_up(n_classes, lane))

    params = []
    for i, (fi, fo) in enumerate(dims):
        w = _xavier_uniform(keys[i], fi, fo)          # [in, out] f32
        b = jnp.zeros((fo,), jnp.float32)
        if i < 4:
            gamma = jnp.ones((fo,), jnp.float32)
            beta = jnp.zeros((fo,), jnp.float32)
            run_mean = jnp.zeros((fo,), jnp.float32)
            run_var = jnp.ones((fo,), jnp.float32)
            scale = gamma / jnp.sqrt(run_var + eps)
            w = w * scale[None, :]
            b = b * scale + (beta - run_mean * scale)
        if i == len(dims) - 1 and n_out_pad != fo:
            w = jnp.zeros((w.shape[0], n_out_pad), jnp.float32).at[:, :fo].set(w)
            b = jnp.zeros((n_out_pad,), jnp.float32).at[:fo].set(b)
        params.append(w.astype(compute_dtype))               # bf16 weight (MXU)
        params.append(b.reshape(1, -1).astype(jnp.float32))  # f32 bias
    return params


def ref_forward(x, params, *, relu_in_bf16=None):
    """Pure-JAX mirror of the kernel math (same dtypes / cast points)."""
    if relu_in_bf16 is None:
        relu_in_bf16 = _default_relu_in_bf16()
    w1, b1, w2, b2, w3, b3, w4, b4, w5, b5 = params
    h = x.astype(w1.dtype)
    for w, b in ((w1, b1), (w2, b2), (w3, b3), (w4, b4)):
        z = jnp.dot(h, w, preferred_element_type=jnp.float32) + b
        if relu_in_bf16:
            h = jnp.maximum(z.astype(w.dtype), 0)
        else:
            h = jnp.maximum(z, 0.0).astype(w.dtype)
    out = jnp.dot(h, w5, preferred_element_type=jnp.float32) + b5
    return out.astype(jnp.bfloat16)[:, :2].astype(jnp.float32)


if __name__ == "__main__":
    B, INPUT_DIM, HIDDEN = 8, 32, 256   # small batch/input; hidden_dim = module default

    key = jax.random.PRNGKey(0)
    kx, kx2, kp = jax.random.split(key, 3)
    x = jax.random.normal(kx, (B, INPUT_DIM), jnp.float32)
    params = init_mlp_params(kp, INPUT_DIM, HIDDEN)

    out = mlp_forward(x, params)
    jax.block_until_ready(out)
    assert out.shape == (B, 2)
    ref = ref_forward(x, params)
    assert jnp.allclose(out, ref, atol=2e-2, rtol=2e-2), float(jnp.max(jnp.abs(out - ref)))

    # Multi-tile (grid > 1) pipelined path + ragged batch (row-pad path).
    x2 = jax.random.normal(kx2, (70, INPUT_DIM), jnp.float32)
    out2 = mlp_forward(x2, params, tm=16)   # grid = (5,), last tile zero-padded rows
    jax.block_until_ready(out2)
    ref2 = ref_forward(x2, params)
    assert out2.shape == (70, 2)
    assert jnp.allclose(out2, ref2, atol=2e-2, rtol=2e-2), float(jnp.max(jnp.abs(out2 - ref2)))

    print("KERNEL_OK")
</pallas_src>

<mosaic_0001>
module attributes {stable_mosaic.version = 11 : i64} {
  func.func @kernel(%arg0: i32, %arg1: memref<8x32xf32, #tpu.memory_space<vmem>>, %arg2: memref<32x256xbf16, #tpu.memory_space<vmem>>, %arg3: memref<1x256xf32, #tpu.memory_space<vmem>>, %arg4: memref<256x256xbf16, #tpu.memory_space<vmem>>, %arg5: memref<1x256xf32, #tpu.memory_space<vmem>>, %arg6: memref<256x256xbf16, #tpu.memory_space<vmem>>, %arg7: memref<1x256xf32, #tpu.memory_space<vmem>>, %arg8: memref<256x256xbf16, #tpu.memory_space<vmem>>, %arg9: memref<1x256xf32, #tpu.memory_space<vmem>>, %arg10: memref<256x128xbf16, #tpu.memory_space<vmem>>, %arg11: memref<1x128xf32, #tpu.memory_space<vmem>>, %arg12: memref<8x128xbf16, #tpu.memory_space<vmem>>) attributes {dimension_semantics = [#tpu.dimension_semantics<parallel>], iteration_bounds = array<i64: 1>, scalar_prefetch = 0 : i64, scratch_operands = 0 : i64, tpu.core_type = #tpu.core_type<tc>, window_params = [{transform_indices = @transform_0, window_bounds = array<i64: 8, 32>}, {pipeline_mode = #tpu.pipeline_mode<synchronous>, transform_indices = @transform_1, window_bounds = array<i64: 32, 256>}, {pipeline_mode = #tpu.pipeline_mode<synchronous>, transform_indices = @transform_2, window_bounds = array<i64: 1, 256>}, {pipeline_mode = #tpu.pipeline_mode<synchronous>, transform_indices = @transform_3, window_bounds = array<i64: 256, 256>}, {pipeline_mode = #tpu.pipeline_mode<synchronous>, transform_indices = @transform_4, window_bounds = array<i64: 1, 256>}, {pipeline_mode = #tpu.pipeline_mode<synchronous>, transform_indices = @transform_5, window_bounds = array<i64: 256, 256>}, {pipeline_mode = #tpu.pipeline_mode<synchronous>, transform_indices = @transform_6, window_bounds = array<i64: 1, 256>}, {pipeline_mode = #tpu.pipeline_mode<synchronous>, transform_indices = @transform_7, window_bounds = array<i64: 256, 256>}, {pipeline_mode = #tpu.pipeline_mode<synchronous>, transform_indices = @transform_8, window_bounds = array<i64: 1, 256>}, {pipeline_mode = #tpu.pipeline_mode<synchronous>, transform_indices = @transform_9, window_bounds = array<i64: 256, 128>}, {pipeline_mode = #tpu.pipeline_mode<synchronous>, transform_indices = @transform_10, window_bounds = array<i64: 1, 128>}, {transform_indices = @transform_11, window_bounds = array<i64: 8, 128>}]} {
    %c0 = arith.constant 0 : index
    %c0_0 = arith.constant 0 : index
    %0 = vector.load %arg1[%c0, %c0_0] : memref<8x32xf32, #tpu.memory_space<vmem>>, vector<8x32xf32>
    %1 = arith.truncf %0 : vector<8x32xf32> to vector<8x32xbf16>
    %c0_1 = arith.constant 0 : index
    %c0_2 = arith.constant 0 : index
    %2 = vector.load %arg2[%c0_1, %c0_2] : memref<32x256xbf16, #tpu.memory_space<vmem>>, vector<32x256xbf16>
    %cst = arith.constant dense<0.000000e+00> : vector<8x256xf32>
    %3 = tpu.matmul %1, %2, %cst {dimension_numbers = #tpu.dot_dimension_numbers<[1], [0], [0], [1], [0, 0, 1, 1], [], []>} : vector<8x32xbf16>, vector<32x256xbf16>, vector<8x256xf32> -> vector<8x256xf32>
    %c0_3 = arith.constant 0 : index
    %c0_4 = arith.constant 0 : index
    %4 = vector.load %arg3[%c0_3, %c0_4] : memref<1x256xf32, #tpu.memory_space<vmem>>, vector<1x256xf32>
    %5 = vector.broadcast %4 : vector<1x256xf32> to vector<8x256xf32>
    %6 = arith.addf %3, %5 : vector<8x256xf32>
    %7 = arith.truncf %6 : vector<8x256xf32> to vector<8x256xbf16>
    %cst_5 = arith.constant 0.000000e+00 : bf16
    %8 = vector.broadcast %cst_5 : bf16 to vector<8x256xbf16>
    %9 = arith.maximumf %7, %8 : vector<8x256xbf16>
    %c0_6 = arith.constant 0 : index
    %c0_7 = arith.constant 0 : index
    %10 = vector.load %arg4[%c0_6, %c0_7] : memref<256x256xbf16, #tpu.memory_space<vmem>>, vector<256x256xbf16>
    %cst_8 = arith.constant dense<0.000000e+00> : vector<8x256xf32>
    %11 = tpu.matmul %9, %10, %cst_8 {dimension_numbers = #tpu.dot_dimension_numbers<[1], [0], [0], [1], [0, 0, 1, 1], [], []>} : vector<8x256xbf16>, vector<256x256xbf16>, vector<8x256xf32> -> vector<8x256xf32>
    %c0_9 = arith.constant 0 : index
    %c0_10 = arith.constant 0 : index
    %12 = vector.load %arg5[%c0_9, %c0_10] : memref<1x256xf32, #tpu.memory_space<vmem>>, vector<1x256xf32>
    %13 = vector.broadcast %12 : vector<1x256xf32> to vector<8x256xf32>
    %14 = arith.addf %11, %13 : vector<8x256xf32>
    %15 = arith.truncf %14 : vector<8x256xf32> to vector<8x256xbf16>
    %cst_11 = arith.constant 0.000000e+00 : bf16
    %16 = vector.broadcast %cst_11 : bf16 to vector<8x256xbf16>
    %17 = arith.maximumf %15, %16 : vector<8x256xbf16>
    %c0_12 = arith.constant 0 : index
    %c0_13 = arith.constant 0 : index
    %18 = vector.load %arg6[%c0_12, %c0_13] : memref<256x256xbf16, #tpu.memory_space<vmem>>, vector<256x256xbf16>
    %cst_14 = arith.constant dense<0.000000e+00> : vector<8x256xf32>
    %19 = tpu.matmul %17, %18, %cst_14 {dimension_numbers = #tpu.dot_dimension_numbers<[1], [0], [0], [1], [0, 0, 1, 1], [], []>} : vector<8x256xbf16>, vector<256x256xbf16>, vector<8x256xf32> -> vector<8x256xf32>
    %c0_15 = arith.constant 0 : index
    %c0_16 = arith.constant 0 : index
    %20 = vector.load %arg7[%c0_15, %c0_16] : memref<1x256xf32, #tpu.memory_space<vmem>>, vector<1x256xf32>
    %21 = vector.broadcast %20 : vector<1x256xf32> to vector<8x256xf32>
    %22 = arith.addf %19, %21 : vector<8x256xf32>
    %23 = arith.truncf %22 : vector<8x256xf32> to vector<8x256xbf16>
    %cst_17 = arith.constant 0.000000e+00 : bf16
    %24 = vector.broadcast %cst_17 : bf16 to vector<8x256xbf16>
    %25 = arith.maximumf %23, %24 : vector<8x256xbf16>
    %c0_18 = arith.constant 0 : index
    %c0_19 = arith.constant 0 : index
    %26 = vector.load %arg8[%c0_18, %c0_19] : memref<256x256xbf16, #tpu.memory_space<vmem>>, vector<256x256xbf16>
    %cst_20 = arith.constant dense<0.000000e+00> : vector<8x256xf32>
    %27 = tpu.matmul %25, %26, %cst_20 {dimension_numbers = #tpu.dot_dimension_numbers<[1], [0], [0], [1], [0, 0, 1, 1], [], []>} : vector<8x256xbf16>, vector<256x256xbf16>, vector<8x256xf32> -> vector<8x256xf32>
    %c0_21 = arith.constant 0 : index
    %c0_22 = arith.constant 0 : index
    %28 = vector.load %arg9[%c0_21, %c0_22] : memref<1x256xf32, #tpu.memory_space<vmem>>, vector<1x256xf32>
    %29 = vector.broadcast %28 : vector<1x256xf32> to vector<8x256xf32>
    %30 = arith.addf %27, %29 : vector<8x256xf32>
    %31 = arith.truncf %30 : vector<8x256xf32> to vector<8x256xbf16>
    %cst_23 = arith.constant 0.000000e+00 : bf16
    %32 = vector.broadcast %cst_23 : bf16 to vector<8x256xbf16>
    %33 = arith.maximumf %31, %32 : vector<8x256xbf16>
    %c0_24 = arith.constant 0 : index
    %c0_25 = arith.constant 0 : index
    %34 = vector.load %arg10[%c0_24, %c0_25] : memref<256x128xbf16, #tpu.memory_space<vmem>>, vector<256x128xbf16>
    %cst_26 = arith.constant dense<0.000000e+00> : vector<8x128xf32>
    %35 = tpu.matmul %33, %34, %cst_26 {dimension_numbers = #tpu.dot_dimension_numbers<[1], [0], [0], [1], [0, 0, 1, 1], [], []>} : vector<8x256xbf16>, vector<256x128xbf16>, vector<8x128xf32> -> vector<8x128xf32>
    %c0_27 = arith.constant 0 : index
    %c0_28 = arith.constant 0 : index
    %36 = vector.load %arg11[%c0_27, %c0_28] : memref<1x128xf32, #tpu.memory_space<vmem>>, vector<1x128xf32>
    %37 = vector.broadcast %36 : vector<1x128xf32> to vector<8x128xf32>
    %38 = arith.addf %35, %37 : vector<8x128xf32>
    %39 = arith.truncf %38 : vector<8x128xf32> to vector<8x128xbf16>
    %c0_29 = arith.constant 0 : index
    %c0_30 = arith.constant 0 : index
    %40 = vector.load %arg12[%c0_29, %c0_30] : memref<8x128xbf16, #tpu.memory_space<vmem>>, vector<8x128xbf16>
    tpu.vector_store %arg12[%c0_29, %c0_30], %39 {strides = array<i32>} : memref<8x128xbf16, #tpu.memory_space<vmem>>, vector<8x128xbf16>,
    return
  }
  func.func @transform_0(%arg0: i32) -> (i32, i32) {
    %c0_i32 = arith.constant 0 : i32
    %c0_i32_0 = arith.constant 0 : i32
    return %arg0, %c0_i32 : i32, i32
  }
  func.func @transform_1(%arg0: i32) -> (i32, i32) {
    %c0_i32 = arith.constant 0 : i32
    %c0_i32_0 = arith.constant 0 : i32
    %c0_i32_1 = arith.constant 0 : i32
    return %c0_i32, %c0_i32_0 : i32, i32
  }
  func.func @transform_2(%arg0: i32) -> (i32, i32) {
    %c0_i32 = arith.constant 0 : i32
    %c0_i32_0 = arith.constant 0 : i32
    %c0_i32_1 = arith.constant 0 : i32
    return %c0_i32, %c0_i32_0 : i32, i32
  }
  func.func @transform_3(%arg0: i32) -> (i32, i32) {
    %c0_i32 = arith.constant 0 : i32
    %c0_i32_0 = arith.constant 0 : i32
    %c0_i32_1 = arith.constant 0 : i32
    return %c0_i32, %c0_i32_0 : i32, i32
  }
  func.func @transform_4(%arg0: i32) -> (i32, i32) {
    %c0_i32 = arith.constant 0 : i32
    %c0_i32_0 = arith.constant 0 : i32
    %c0_i32_1 = arith.constant 0 : i32
    return %c0_i32, %c0_i32_0 : i32, i32
  }
  func.func @transform_5(%arg0: i32) -> (i32, i32) {
    %c0_i32 = arith.constant 0 : i32
    %c0_i32_0 = arith.constant 0 : i32
    %c0_i32_1 = arith.constant 0 : i32
    return %c0_i32, %c0_i32_0 : i32, i32
  }
  func.func @transform_6(%arg0: i32) -> (i32, i32) {
    %c0_i32 = arith.constant 0 : i32
    %c0_i32_0 = arith.constant 0 : i32
    %c0_i32_1 = arith.constant 0 : i32
    return %c0_i32, %c0_i32_0 : i32, i32
  }
  func.func @transform_7(%arg0: i32) -> (i32, i32) {
    %c0_i32 = arith.constant 0 : i32
    %c0_i32_0 = arith.constant 0 : i32
    %c0_i32_1 = arith.constant 0 : i32
    return %c0_i32, %c0_i32_0 : i32, i32
  }
  func.func @transform_8(%arg0: i32) -> (i32, i32) {
    %c0_i32 = arith.constant 0 : i32
    %c0_i32_0 = arith.constant 0 : i32
    %c0_i32_1 = arith.constant 0 : i32
    return %c0_i32, %c0_i32_0 : i32, i32
  }
  func.func @transform_9(%arg0: i32) -> (i32, i32) {
    %c0_i32 = arith.constant 0 : i32
    %c0_i32_0 = arith.constant 0 : i32
    %c0_i32_1 = arith.constant 0 : i32
    return %c0_i32, %c0_i32_0 : i32, i32
  }
  func.func @transform_10(%arg0: i32) -> (i32, i32) {
    %c0_i32 = arith.constant 0 : i32
    %c0_i32_0 = arith.constant 0 : i32
    %c0_i32_1 = arith.constant 0 : i32
    return %c0_i32, %c0_i32_0 : i32, i32
  }
  func.func @transform_11(%arg0: i32) -> (i32, i32) {
    %c0_i32 = arith.constant 0 : i32
    %c0_i32_0 = arith.constant 0 : i32
    return %arg0, %c0_i32 : i32, i32
  }
}

module attributes {stable_mosaic.version = 11 : i64} {
  func.func @kernel(%arg0: i32, %arg1: memref<8x32xf32, #tpu.memory_space<vmem>>, %arg2: memref<32x256xbf16, #tpu.memory_space<vmem>>, %arg3: memref<1x256xf32, #tpu.memory_space<vmem>>, %arg4: memref<256x256xbf16, #tpu.memory_space<vmem>>, %arg5: memref<1x256xf32, #tpu.memory_space<vmem>>, %arg6: memref<256x256xbf16, #tpu.memory_space<vmem>>, %arg7: memref<1x256xf32, #tpu.memory_space<vmem>>, %arg8: memref<256x256xbf16, #tpu.memory_space<vmem>>, %arg9: memref<1x256xf32, #tpu.memory_space<vmem>>, %arg10: memref<256x128xbf16, #tpu.memory_space<vmem>>, %arg11: memref<1x128xf32, #tpu.memory_space<vmem>>, %arg12: memref<8x128xbf16, #tpu.memory_space<vmem>>) attributes {dimension_semantics = [#tpu.dimension_semantics<parallel>], iteration_bounds = array<i64: 1>, scalar_prefetch = 0 : i64, scratch_operands = 0 : i64, tpu.core_type = #tpu.core_type<tc>, window_params = [{transform_indices = @transform_0, window_bounds = array<i64: 8, 32>}, {pipeline_mode = #tpu.pipeline_mode<synchronous>, transform_indices = @transform_1, window_bounds = array<i64: 32, 256>}, {pipeline_mode = #tpu.pipeline_mode<synchronous>, transform_indices = @transform_2, window_bounds = array<i64: 1, 256>}, {pipeline_mode = #tpu.pipeline_mode<synchronous>, transform_indices = @transform_3, window_bounds = array<i64: 256, 256>}, {pipeline_mode = #tpu.pipeline_mode<synchronous>, transform_indices = @transform_4, window_bounds = array<i64: 1, 256>}, {pipeline_mode = #tpu.pipeline_mode<synchronous>, transform_indices = @transform_5, window_bounds = array<i64: 256, 256>}, {pipeline_mode = #tpu.pipeline_mode<synchronous>, transform_indices = @transform_6, window_bounds = array<i64: 1, 256>}, {pipeline_mode = #tpu.pipeline_mode<synchronous>, transform_indices = @transform_7, window_bounds = array<i64: 256, 256>}, {pipeline_mode = #tpu.pipeline_mode<synchronous>, transform_indices = @transform_8, window_bounds = array<i64: 1, 256>}, {pipeline_mode = #tpu.pipeline_mode<synchronous>, transform_indices = @transform_9, window_bounds = array<i64: 256, 128>}, {pipeline_mode = #tpu.pipeline_mode<synchronous>, transform_indices = @transform_10, window_bounds = array<i64: 1, 128>}, {transform_indices = @transform_11, window_bounds = array<i64: 8, 128>}]} {
    %c0 = arith.constant 0 : index
    %c0_0 = arith.constant 0 : index
    %0 = vector.load %arg1[%c0, %c0_0] : memref<8x32xf32, #tpu.memory_space<vmem>>, vector<8x32xf32>
    %1 = arith.truncf %0 : vector<8x32xf32> to vector<8x32xbf16>
    %c0_1 = arith.constant 0 : index
    %c0_2 = arith.constant 0 : index
    %2 = vector.load %arg2[%c0_1, %c0_2] : memref<32x256xbf16, #tpu.memory_space<vmem>>, vector<32x256xbf16>
    %cst = arith.constant dense<0.000000e+00> : vector<8x256xf32>
    %3 = tpu.matmul %1, %2, %cst {dimension_numbers = #tpu.dot_dimension_numbers<[1], [0], [0], [1], [0, 0, 1, 1], [], []>} : vector<8x32xbf16>, vector<32x256xbf16>, vector<8x256xf32> -> vector<8x256xf32>
    %c0_3 = arith.constant 0 : index
    %c0_4 = arith.constant 0 : index
    %4 = vector.load %arg3[%c0_3, %c0_4] : memref<1x256xf32, #tpu.memory_space<vmem>>, vector<1x256xf32>
    %5 = vector.broadcast %4 : vector<1x256xf32> to vector<8x256xf32>
    %6 = arith.addf %3, %5 : vector<8x256xf32>
    %7 = arith.truncf %6 : vector<8x256xf32> to vector<8x256xbf16>
    %cst_5 = arith.constant 0.000000e+00 : bf16
    %8 = vector.broadcast %cst_5 : bf16 to vector<8x256xbf16>
    %9 = arith.maximumf %7, %8 : vector<8x256xbf16>
    %c0_6 = arith.constant 0 : index
    %c0_7 = arith.constant 0 : index
    %10 = vector.load %arg4[%c0_6, %c0_7] : memref<256x256xbf16, #tpu.memory_space<vmem>>, vector<256x256xbf16>
    %cst_8 = arith.constant dense<0.000000e+00> : vector<8x256xf32>
    %11 = tpu.matmul %9, %10, %cst_8 {dimension_numbers = #tpu.dot_dimension_numbers<[1], [0], [0], [1], [0, 0, 1, 1], [], []>} : vector<8x256xbf16>, vector<256x256xbf16>, vector<8x256xf32> -> vector<8x256xf32>
    %c0_9 = arith.constant 0 : index
    %c0_10 = arith.constant 0 : index
    %12 = vector.load %arg5[%c0_9, %c0_10] : memref<1x256xf32, #tpu.memory_space<vmem>>, vector<1x256xf32>
    %13 = vector.broadcast %12 : vector<1x256xf32> to vector<8x256xf32>
    %14 = arith.addf %11, %13 : vector<8x256xf32>
    %15 = arith.truncf %14 : vector<8x256xf32> to vector<8x256xbf16>
    %cst_11 = arith.constant 0.000000e+00 : bf16
    %16 = vector.broadcast %cst_11 : bf16 to vector<8x256xbf16>
    %17 = arith.maximumf %15, %16 : vector<8x256xbf16>
    %c0_12 = arith.constant 0 : index
    %c0_13 = arith.constant 0 : index
    %18 = vector.load %arg6[%c0_12, %c0_13] : memref<256x256xbf16, #tpu.memory_space<vmem>>, vector<256x256xbf16>
    %cst_14 = arith.constant dense<0.000000e+00> : vector<8x256xf32>
    %19 = tpu.matmul %17, %18, %cst_14 {dimension_numbers = #tpu.dot_dimension_numbers<[1], [0], [0], [1], [0, 0, 1, 1], [], []>} : vector<8x256xbf16>, vector<256x256xbf16>, vector<8x256xf32> -> vector<8x256xf32>
    %c0_15 = arith.constant 0 : index
    %c0_16 = arith.constant 0 : index
    %20 = vector.load %arg7[%c0_15, %c0_16] : memref<1x256xf32, #tpu.memory_space<vmem>>, vector<1x256xf32>
    %21 = vector.broadcast %20 : vector<1x256xf32> to vector<8x256xf32>
    %22 = arith.addf %19, %21 : vector<8x256xf32>
    %23 = arith.truncf %22 : vector<8x256xf32> to vector<8x256xbf16>
    %cst_17 = arith.constant 0.000000e+00 : bf16
    %24 = vector.broadcast %cst_17 : bf16 to vector<8x256xbf16>
    %25 = arith.maximumf %23, %24 : vector<8x256xbf16>
    %c0_18 = arith.constant 0 : index
    %c0_19 = arith.constant 0 : index
    %26 = vector.load %arg8[%c0_18, %c0_19] : memref<256x256xbf16, #tpu.memory_space<vmem>>, vector<256x256xbf16>
    %cst_20 = arith.constant dense<0.000000e+00> : vector<8x256xf32>
    %27 = tpu.matmul %25, %26, %cst_20 {dimension_numbers = #tpu.dot_dimension_numbers<[1], [0], [0], [1], [0, 0, 1, 1], [], []>} : vector<8x256xbf16>, vector<256x256xbf16>, vector<8x256xf32> -> vector<8x256xf32>
    %c0_21 = arith.constant 0 : index
    %c0_22 = arith.constant 0 : index
    %28 = vector.load %arg9[%c0_21, %c0_22] : memref<1x256xf32, #tpu.memory_space<vmem>>, vector<1x256xf32>
    %29 = vector.broadcast %28 : vector<1x256xf32> to vector<8x256xf32>
    %30 = arith.addf %27, %29 : vector<8x256xf32>
    %31 = arith.truncf %30 : vector<8x256xf32> to vector<8x256xbf16>
    %cst_23 = arith.constant 0.000000e+00 : bf16
    %32 = vector.broadcast %cst_23 : bf16 to vector<8x256xbf16>
    %33 = arith.maximumf %31, %32 : vector<8x256xbf16>
    %c0_24 = arith.constant 0 : index
    %c0_25 = arith.constant 0 : index
    %34 = vector.load %arg10[%c0_24, %c0_25] : memref<256x128xbf16, #tpu.memory_space<vmem>>, vector<256x128xbf16>
    %cst_26 = arith.constant dense<0.000000e+00> : vector<8x128xf32>
    %35 = tpu.matmul %33, %34, %cst_26 {dimension_numbers = #tpu.dot_dimension_numbers<[1], [0], [0], [1], [0, 0, 1, 1], [], []>} : vector<8x256xbf16>, vector<256x128xbf16>, vector<8x128xf32> -> vector<8x128xf32>
    %c0_27 = arith.constant 0 : index
    %c0_28 = arith.constant 0 : index
    %36 = vector.load %arg11[%c0_27, %c0_28] : memref<1x128xf32, #tpu.memory_space<vmem>>, vector<1x128xf32>
    %37 = vector.broadcast %36 : vector<1x128xf32> to vector<8x128xf32>
    %38 = arith.addf %35, %37 : vector<8x128xf32>
    %39 = arith.truncf %38 : vector<8x128xf32> to vector<8x128xbf16>
    %c0_29 = arith.constant 0 : index
    %c0_30 = arith.constant 0 : index
    %40 = vector.load %arg12[%c0_29, %c0_30] : memref<8x128xbf16, #tpu.memory_space<vmem>>, vector<8x128xbf16>
    tpu.vector_store %arg12[%c0_29, %c0_30], %39 {strides = array<i32>} : memref<8x128xbf16, #tpu.memory_space<vmem>>, vector<8x128xbf16>,
    return
  }
  func.func @transform_0(%arg0: i32) -> (i32, i32) {
    %c0_i32 = arith.constant 0 : i32
    %c0_i32_0 = arith.constant 0 : i32
    return %arg0, %c0_i32 : i32, i32
  }
  func.func @transform_1(%arg0: i32) -> (i32, i32) {
    %c0_i32 = arith.constant 0 : i32
    %c0_i32_0 = arith.constant 0 : i32
    %c0_i32_1 = arith.constant 0 : i32
    return %c0_i32, %c0_i32_0 : i32, i32
  }
  func.func @transform_2(%arg0: i32) -> (i32, i32) {
    %c0_i32 = arith.constant 0 : i32
    %c0_i32_0 = arith.constant 0 : i32
    %c0_i32_1 = arith.constant 0 : i32
    return %c0_i32, %c0_i32_0 : i32, i32
  }
  func.func @transform_3(%arg0: i32) -> (i32, i32) {
    %c0_i32 = arith.constant 0 : i32
    %c0_i32_0 = arith.constant 0 : i32
    %c0_i32_1 = arith.constant 0 : i32
    return %c0_i32, %c0_i32_0 : i32, i32
  }
  func.func @transform_4(%arg0: i32) -> (i32, i32) {
    %c0_i32 = arith.constant 0 : i32
    %c0_i32_0 = arith.constant 0 : i32
    %c0_i32_1 = arith.constant 0 : i32
    return %c0_i32, %c0_i32_0 : i32, i32
  }
  func.func @transform_5(%arg0: i32) -> (i32, i32) {
    %c0_i32 = arith.constant 0 : i32
    %c0_i32_0 = arith.constant 0 : i32
    %c0_i32_1 = arith.constant 0 : i32
    return %c0_i32, %c0_i32_0 : i32, i32
  }
  func.func @transform_6(%arg0: i32) -> (i32, i32) {
    %c0_i32 = arith.constant 0 : i32
    %c0_i32_0 = arith.constant 0 : i32
    %c0_i32_1 = arith.constant 0 : i32
    return %c0_i32, %c0_i32_0 : i32, i32
  }
  func.func @transform_7(%arg0: i32) -> (i32, i32) {
    %c0_i32 = arith.constant 0 : i32
    %c0_i32_0 = arith.constant 0 : i32
    %c0_i32_1 = arith.constant 0 : i32
    return %c0_i32, %c0_i32_0 : i32, i32
  }
  func.func @transform_8(%arg0: i32) -> (i32, i32) {
    %c0_i32 = arith.constant 0 : i32
    %c0_i32_0 = arith.constant 0 : i32
    %c0_i32_1 = arith.constant 0 : i32
    return %c0_i32, %c0_i32_0 : i32, i32
  }
  func.func @transform_9(%arg0: i32) -> (i32, i32) {
    %c0_i32 = arith.constant 0 : i32
    %c0_i32_0 = arith.constant 0 : i32
    %c0_i32_1 = arith.constant 0 : i32
    return %c0_i32, %c0_i32_0 : i32, i32
  }
  func.func @transform_10(%arg0: i32) -> (i32, i32) {
    %c0_i32 = arith.constant 0 : i32
    %c0_i32_0 = arith.constant 0 : i32
    %c0_i32_1 = arith.constant 0 : i32
    return %c0_i32, %c0_i32_0 : i32, i32
  }
  func.func @transform_11(%arg0: i32) -> (i32, i32) {
    %c0_i32 = arith.constant 0 : i32
    %c0_i32_0 = arith.constant 0 : i32
    return %arg0, %c0_i32 : i32, i32
  }
}

</mosaic_0001>

<llo_original>
// kernel: tpu_custom_call.1
$region0: #{tpu_custom_call.1}
  #allocation0 [shape = 'u32[]', space=smem, size = 0x4, offset = 0x4, fixed_abs, tag = 'smem constant byte address 0x4 - core index']
  #allocation1 [shape = 'u32[72,128]{1,0:T(1,128)}', space=vmem, size = 0x9000, scoped, tag = 'internal scratch']
  %s0 = inlined_call_operand.hbm [shape: f32[8,32], index: 0, kind: input, shape index: {}]
  %s1 = inlined_call_operand.hbm [shape: bf16[32,256], index: 1, kind: input, shape index: {}]
  %s2 = inlined_call_operand.hbm [shape: f32[1,256], index: 2, kind: input, shape index: {}]
  %s3 = inlined_call_operand.hbm [shape: bf16[256,256], index: 3, kind: input, shape index: {}]
  %s4 = inlined_call_operand.vmem [shape: f32[1,256], index: 4, kind: input, shape index: {}]
  %s5 = inlined_call_operand.hbm [shape: bf16[256,256], index: 5, kind: input, shape index: {}]
  %s6 = inlined_call_operand.vmem [shape: f32[1,256], index: 6, kind: input, shape index: {}]
  %s7 = inlined_call_operand.hbm [shape: bf16[256,256], index: 7, kind: input, shape index: {}]
  %s8 = inlined_call_operand.vmem [shape: f32[1,256], index: 8, kind: input, shape index: {}]
  %s9 = inlined_call_operand.hbm [shape: bf16[256,128], index: 9, kind: input, shape index: {}]
  %s10 = inlined_call_operand.vmem [shape: f32[1,128], index: 10, kind: input, shape index: {}]
  %s11 = inlined_call_operand.hbm [shape: bf16[8,128], index: 11, kind: output, shape index: {}]
  %s12 = sld [smem:[#allocation0]]
  $region82: #{tpu_custom_call.1} parent=0
    _
  %s14 = ssub.s32 1, %s12
  %s15 = scalar_select 0, %s14, %s12
  $region1: #{tpu_custom_call.1} parent=0
    #allocation2 [shape = 'u8[4096]{0}', space=vmem, size = 0x1000, scoped, tag = 'input window, operand 0, single buffered']
    #allocation3 [shape = 's32[1]{0}', space=sflag, size = 0x4, scoped, tag = 'scoped memory for tpu_custom_call.1']
    #allocation4 [shape = 's32[1]{0}', space=sflag, size = 0x4, scoped, tag = 'scoped memory for tpu_custom_call.1']
    #allocation5 [shape = 'u8[16384]{0}', space=vmem, size = 0x4000, scoped, tag = 'input window, operand 1, single buffered']
    #allocation6 [shape = 's32[1]{0}', space=sflag, size = 0x4, scoped, tag = 'scoped memory for tpu_custom_call.1']
    #allocation7 [shape = 'u8[1024]{0}', space=vmem, size = 0x400, scoped, tag = 'input window, operand 2, single buffered']
    #allocation8 [shape = 'u8[131072]{0}', space=vmem, size = 0x20000, scoped, tag = 'input window, operand 3, single buffered']
    #allocation9 [shape = 's32[1]{0}', space=sflag, size = 0x4, scoped, tag = 'scoped memory for tpu_custom_call.1']
    #allocation10 [shape = 'u8[131072]{0}', space=vmem, size = 0x20000, scoped, tag = 'input window, operand 5, single buffered']
    #allocation11 [shape = 'u8[131072]{0}', space=vmem, size = 0x20000, scoped, tag = 'input window, operand 7, single buffered']
    #allocation12 [shape = 's32[1]{0}', space=sflag, size = 0x4, scoped, tag = 'scoped memory for tpu_custom_call.1']
    #allocation13 [shape = 'u8[65536]{0}', space=vmem, size = 0x10000, scoped, tag = 'input window, operand 9, single buffered']
    #allocation14 [shape = 'u8[2048]{0}', space=vmem, size = 0x800, scoped, tag = 'output window, operand 0, single buffered']
    %16 = vsyncpa [#allocation3], 0
    %17 = vsyncpa [#allocation6], 0
    %18 = vsyncpa [#allocation9], 0
    %19 = vsyncpa [#allocation12], 0
    %20 = vsyncpa [#allocation4], 0
    // Predicated region
    $region2: #{tpu_custom_call.1} parent=1 // pred_check
      _
    $region3: #{tpu_custom_call.1} parent=1 // pred_check_branch
      %22 = sbr.rel (0) target = $region5
    $region4: #{tpu_custom_call.1} parent=1 // pred_region
      %24 = vsyncadd [#allocation3], 0
      %s26 = sshll.u32 %s0, 4
      %s27 = int_to_ptr.hbm [resolvable:$true] %s26
      %s28 = sshll.u32 [#allocation2], 4
      %s29 = int_to_ptr.vmem [resolvable:$true] %s28
      %31 = dma.hbm_to_vmem [thread:$0]  %s27, 128, %s29, [#allocation3]
    $region5: #{tpu_custom_call.1} parent=1 // pred_fallthru
      _
    // Predicated region
    $region6: #{tpu_custom_call.1} parent=1 // pred_check
      _
    $region7: #{tpu_custom_call.1} parent=1 // pred_check_branch
      %33 = sbr.rel (0) target = $region9
    $region8: #{tpu_custom_call.1} parent=1 // pred_region
      %35 = vsyncadd [#allocation6], 0
      %s36 = sshll.u32 %s1, 4
      %s37 = int_to_ptr.hbm [resolvable:$true] %s36
      %s38 = sshll.u32 [#allocation5], 4
      %s39 = int_to_ptr.vmem [resolvable:$true] %s38
      %44 = dma.hbm_to_vmem [thread:$0]  %s37, 512, %s39, [#allocation6], 128, 128, 8
    $region9: #{tpu_custom_call.1} parent=1 // pred_fallthru
      _
    // Predicated region
    $region10: #{tpu_custom_call.1} parent=1 // pred_check
      _
    $region11: #{tpu_custom_call.1} parent=1 // pred_check_branch
      %46 = sbr.rel (0) target = $region13
    $region12: #{tpu_custom_call.1} parent=1 // pred_region
      %48 = vsyncadd [#allocation6], 0
      %s50 = sshll.u32 %s2, 4
      %s51 = int_to_ptr.hbm [resolvable:$true] %s50
      %s52 = sshll.u32 [#allocation7], 4
      %s53 = int_to_ptr.vmem [resolvable:$true] %s52
      %55 = dma.hbm_to_vmem [thread:$0]  %s51, 32, %s53, [#allocation6]
    $region13: #{tpu_custom_call.1} parent=1 // pred_fallthru
      _
    // Predicated region
    $region14: #{tpu_custom_call.1} parent=1 // pred_check
      _
    $region15: #{tpu_custom_call.1} parent=1 // pred_check_branch
      %57 = sbr.rel (0) target = $region17
    $region16: #{tpu_custom_call.1} parent=1 // pred_region
      %59 = vsyncadd [#allocation9], 0
      %s60 = sshll.u32 %s3, 4
      %s61 = int_to_ptr.hbm [resolvable:$true] %s60
      %s62 = sshll.u32 [#allocation8], 4
      %s63 = int_to_ptr.vmem [resolvable:$true] %s62
      %68 = dma.hbm_to_vmem [thread:$0]  %s61, 4096, %s63, [#allocation9], 128, 128, 8
    $region17: #{tpu_custom_call.1} parent=1 // pred_fallthru
      _
    // Predicated region
    $region18: #{tpu_custom_call.1} parent=1 // pred_check
      _
    $region19: #{tpu_custom_call.1} parent=1 // pred_check_branch
      %70 = sbr.rel (0) target = $region21
    $region20: #{tpu_custom_call.1} parent=1 // pred_region
      _
    $region21: #{tpu_custom_call.1} parent=1 // pred_fallthru
      _
    // Predicated region
    $region22: #{tpu_custom_call.1} parent=1 // pred_check
      _
    $region23: #{tpu_custom_call.1} parent=1 // pred_check_branch
      %72 = sbr.rel (0) target = $region25
    $region24: #{tpu_custom_call.1} parent=1 // pred_region
      %74 = vsyncadd [#allocation9], 0
      %s75 = sshll.u32 %s5, 4
      %s76 = int_to_ptr.hbm [resolvable:$true] %s75
      %s77 = sshll.u32 [#allocation10], 4
      %s78 = int_to_ptr.vmem [resolvable:$true] %s77
      %83 = dma.hbm_to_vmem [thread:$0]  %s76, 4096, %s78, [#allocation9], 128, 128, 8
    $region25: #{tpu_custom_call.1} parent=1 // pred_fallthru
      _
    // Predicated region
    $region26: #{tpu_custom_call.1} parent=1 // pred_check
      _
    $region27: #{tpu_custom_call.1} parent=1 // pred_check_branch
      %85 = sbr.rel (0) target = $region29
    $region28: #{tpu_custom_call.1} parent=1 // pred_region
      _
    $region29: #{tpu_custom_call.1} parent=1 // pred_fallthru
      _
    // Predicated region
    $region30: #{tpu_custom_call.1} parent=1 // pred_check
      _
    $region31: #{tpu_custom_call.1} parent=1 // pred_check_branch
      %87 = sbr.rel (0) target = $region33
    $region32: #{tpu_custom_call.1} parent=1 // pred_region
      %89 = vsyncadd [#allocation12], 0
      %s90 = sshll.u32 %s7, 4
      %s91 = int_to_ptr.hbm [resolvable:$true] %s90
      %s92 = sshll.u32 [#allocation11], 4
      %s93 = int_to_ptr.vmem [resolvable:$true] %s92
      %98 = dma.hbm_to_vmem [thread:$0]  %s91, 4096, %s93, [#allocation12], 128, 128, 8
    $region33: #{tpu_custom_call.1} parent=1 // pred_fallthru
      _
    // Predicated region
    $region34: #{tpu_custom_call.1} parent=1 // pred_check
      _
    $region35: #{tpu_custom_call.1} parent=1 // pred_check_branch
      %100 = sbr.rel (0) target = $region37
    $region36: #{tpu_custom_call.1} parent=1 // pred_region
      _
    $region37: #{tpu_custom_call.1} parent=1 // pred_fallthru
      _
    // Predicated region
    $region38: #{tpu_custom_call.1} parent=1 // pred_check
      _
    $region39: #{tpu_custom_call.1} parent=1 // pred_check_branch
      %102 = sbr.rel (0) target = $region41
    $region40: #{tpu_custom_call.1} parent=1 // pred_region
      %104 = vsyncadd [#allocation12], 0
      %s105 = sshll.u32 %s9, 4
      %s106 = int_to_ptr.hbm [resolvable:$true] %s105
      %s107 = sshll.u32 [#allocation13], 4
      %s108 = int_to_ptr.vmem [resolvable:$true] %s107
      %113 = dma.hbm_to_vmem [thread:$0]  %s106, 2048, %s108, [#allocation12], 64, 64, 4
    $region41: #{tpu_custom_call.1} parent=1 // pred_fallthru
      _
    // Predicated region
    $region42: #{tpu_custom_call.1} parent=1 // pred_check
      _
    $region43: #{tpu_custom_call.1} parent=1 // pred_check_branch
      %115 = sbr.rel (0) target = $region45
    $region44: #{tpu_custom_call.1} parent=1 // pred_region
      _
    $region45: #{tpu_custom_call.1} parent=1 // pred_fallthru
      _
    // Predicated region
    $region46: #{tpu_custom_call.1} parent=1 // pred_check
      _
    $region47: #{tpu_custom_call.1} parent=1 // pred_check_branch
      %117 = sbr.rel (0) target = $region49
    $region48: #{tpu_custom_call.1} parent=1 // pred_region
      %119 = dma.done [#allocation3], 128
    $region49: #{tpu_custom_call.1} parent=1 // pred_fallthru
      _
    // Predicated region
    $region50: #{tpu_custom_call.1} parent=1 // pred_check
      _
    $region51: #{tpu_custom_call.1} parent=1 // pred_check_branch
      %121 = sbr.rel (0) target = $region53
    $region52: #{tpu_custom_call.1} parent=1 // pred_region
      %123 = dma.done [#allocation6], 512
    $region53: #{tpu_custom_call.1} parent=1 // pred_fallthru
      _
    // Predicated region
    $region54: #{tpu_custom_call.1} parent=1 // pred_check
      _
    $region55: #{tpu_custom_call.1} parent=1 // pred_check_branch
      %125 = sbr.rel (0) target = $region57
    $region56: #{tpu_custom_call.1} parent=1 // pred_region
      %127 = dma.done [#allocation6], 32
    $region57: #{tpu_custom_call.1} parent=1 // pred_fallthru
      _
    // Predicated region
    $region58: #{tpu_custom_call.1} parent=1 // pred_check
      _
    $region59: #{tpu_custom_call.1} parent=1 // pred_check_branch
      %129 = sbr.rel (0) target = $region61
    $region60: #{tpu_custom_call.1} parent=1 // pred_region
      %131 = dma.done [#allocation9], 4096
    $region61: #{tpu_custom_call.1} parent=1 // pred_fallthru
      _
    // Predicated region
    $region62: #{tpu_custom_call.1} parent=1 // pred_check
      _
    $region63: #{tpu_custom_call.1} parent=1 // pred_check_branch
      %133 = sbr.rel (0) target = $region65
    $region64: #{tpu_custom_call.1} parent=1 // pred_region
      %135 = dma.done [#allocation9], 4096
    $region65: #{tpu_custom_call.1} parent=1 // pred_fallthru
      _
    // Predicated region
    $region66: #{tpu_custom_call.1} parent=1 // pred_check
      _
    $region67: #{tpu_custom_call.1} parent=1 // pred_check_branch
      %137 = sbr.rel (0) target = $region69
    $region68: #{tpu_custom_call.1} parent=1 // pred_region
      %139 = dma.done [#allocation12], 4096
    $region69: #{tpu_custom_call.1} parent=1 // pred_fallthru
      _
    // Predicated region
    $region70: #{tpu_custom_call.1} parent=1 // pred_check
      _
    $region71: #{tpu_custom_call.1} parent=1 // pred_check_branch
      %141 = sbr.rel (0) target = $region73
    $region72: #{tpu_custom_call.1} parent=1 // pred_region
      %143 = dma.done [#allocation12], 2048
    $region73: #{tpu_custom_call.1} parent=1 // pred_fallthru
      _
    %v145 = vld [vmem:[#allocation2] sm:$0xff]
    %v146 = vpack.c.bf16 %v145, %v145
    %v147 = vld [vmem:[#allocation5] sm:$0xff]
    %v148 = vld [vmem:[#allocation5 + $0x8] sm:$0xff]
    %v149 = vld [vmem:[#allocation5 + $0x10] sm:$0xff]
    %v150 = vld [vmem:[#allocation5 + $0x18] sm:$0xff]
    %v151 = vld [vmem:[#allocation7] sm:$0x3]
    %v153 = vperm.slane %v151, 0
    %v154 = vperm.slane %v151, 1
    %v161 = vunpack.c.l.b16 %v147
    %v162 = vunpack.c.h.b16 %v147
    %v163 = vunpack.c.l.b16 %v148
    %v164 = vunpack.c.h.b16 %v148
    %v165 = vunpack.c.l.b16 %v149
    %v166 = vunpack.c.h.b16 %v149
    %v167 = vunpack.c.l.b16 %v150
    %v168 = vunpack.c.h.b16 %v150
    %v169 = vpack.c.b16 %v163, %v161
    %v170 = vpack.c.b16 %v164, %v162
    %v171 = vpack.c.b16 %v167, %v165
    %v172 = vpack.c.b16 %v168, %v166
    %vm177 = vcmask 261120
    %v179 = vsel %vm177, %v146, 0
    %181 = vmatpush.bf16.msra.mxu0 0
    %182 = vmatpush.bf16.msra.mxu0 0
    %183 = vmatpush.bf16.msra.mxu0 0
    %184 = vmatpush.bf16.msra.mxu0 0
    %185 = vmatpush.bf16.msra.mxu0 0
    %186 = vmatpush.bf16.msra.mxu0 0
    %187 = vmatpush.bf16.msra.mxu0 %v171
    %188 = vmatpush.bf16.msra.mxu0 %v169
    %189 = vmatmul.bf16.gmra.mxu0 %v179
    %v190 = vpop.f32.mrf.mxu0
    %v191 = vadd.f32 %v153, %v190
    %v192 = vpop.f32.mrf.mxu0
    %193 = vdwg.mxu0
    %194 = vmatpush.bf16.msra.mxu0 0
    %195 = vmatpush.bf16.msra.mxu0 0
    %196 = vmatpush.bf16.msra.mxu0 0
    %197 = vmatpush.bf16.msra.mxu0 0
    %198 = vmatpush.bf16.msra.mxu0 0
    %199 = vmatpush.bf16.msra.mxu0 0
    %200 = vmatpush.bf16.msra.mxu0 %v172
    %201 = vmatpush.bf16.msra.mxu0 %v170
    %202 = vmatmul.bf16.gmra.mxu0 %v179
    %v203 = vpop.f32.mrf.mxu0
    %v204 = vadd.f32 %v154, %v203
    %v205 = vpop.f32.mrf.mxu0
    %206 = vdwg.mxu0
    %v207 = vpack.c.bf16 %v204, %v191
    %v208 = vunpack.c.l.bf16 %v207
    %v209 = vunpack.c.h.bf16 %v207
    %v210 = vmax.f32 %v208, 0.0
    %v211 = vmax.f32 %v209, 0.0
    %v212 = vpack.c.bf16 %v210, %v210
    %v213 = vpack.c.bf16 %v211, %v211
    %v214 = vld [vmem:[#allocation8] sm:$0xff]
    %v215 = vld [vmem:[#allocation8 + $0x8] sm:$0xff]
    %v216 = vld [vmem:[#allocation8 + $0x10] sm:$0xff]
    %v217 = vld [vmem:[#allocation8 + $0x18] sm:$0xff]
    %v218 = vld [vmem:[#allocation8 + $0x20] sm:$0xff]
    %v219 = vld [vmem:[#allocation8 + $0x28] sm:$0xff]
    %v220 = vld [vmem:[#allocation8 + $0x30] sm:$0xff]
    %v221 = vld [vmem:[#allocation8 + $0x38] sm:$0xff]
    %v222 = vld [vmem:[#allocation8 + $0x40] sm:$0xff]
    %v223 = vld [vmem:[#allocation8 + $0x48] sm:$0xff]
    %v224 = vld [vmem:[#allocation8 + $0x50] sm:$0xff]
    %v225 = vld [vmem:[#allocation8 + $0x58] sm:$0xff]
    %v226 = vld [vmem:[#allocation8 + $0x60] sm:$0xff]
    %v227 = vld [vmem:[#allocation8 + $0x68] sm:$0xff]
    %v228 = vld [vmem:[#allocation8 + $0x70] sm:$0xff]
    %v229 = vld [vmem:[#allocation8 + $0x78] sm:$0xff]
    %v230 = vld [vmem:[#allocation8 + $0x80] sm:$0xff]
    %v231 = vld [vmem:[#allocation8 + $0x88] sm:$0xff]
    %v232 = vld [vmem:[#allocation8 + $0x90] sm:$0xff]
    %v233 = vld [vmem:[#allocation8 + $0x98] sm:$0xff]
    %v234 = vld [vmem:[#allocation8 + $0xa0] sm:$0xff]
    %v235 = vld [vmem:[#allocation8 + $0xa8] sm:$0xff]
    %v236 = vld [vmem:[#allocation8 + $0xb0] sm:$0xff]
    %v237 = vld [vmem:[#allocation8 + $0xb8] sm:$0xff]
    %v238 = vld [vmem:[#allocation8 + $0xc0] sm:$0xff]
    %v239 = vld [vmem:[#allocation8 + $0xc8] sm:$0xff]
    %v240 = vld [vmem:[#allocation8 + $0xd0] sm:$0xff]
    %v241 = vld [vmem:[#allocation8 + $0xd8] sm:$0xff]
    %v242 = vld [vmem:[#allocation8 + $0xe0] sm:$0xff]
    %v243 = vld [vmem:[#allocation8 + $0xe8] sm:$0xff]
    %v244 = vld [vmem:[#allocation8 + $0xf0] sm:$0xff]
    %v245 = vld [vmem:[#allocation8 + $0xf8] sm:$0xff]
    %v246 = vld [vmem:[%s4] sm:$0x3]
    %v248 = vperm.slane %v246, 0
    %v249 = vperm.slane %v246, 1
    %v284 = vunpack.c.l.b16 %v214
    %v285 = vunpack.c.h.b16 %v214
    %v286 = vunpack.c.l.b16 %v215
    %v287 = vunpack.c.h.b16 %v215
    %v288 = vunpack.c.l.b16 %v216
    %v289 = vunpack.c.h.b16 %v216
    %v290 = vunpack.c.l.b16 %v217
    %v291 = vunpack.c.h.b16 %v217
    %v292 = vunpack.c.l.b16 %v218
    %v293 = vunpack.c.h.b16 %v218
    %v294 = vunpack.c.l.b16 %v219
    %v295 = vunpack.c.h.b16 %v219
    %v296 = vunpack.c.l.b16 %v220
    %v297 = vunpack.c.h.b16 %v220
    %v298 = vunpack.c.l.b16 %v221
    %v299 = vunpack.c.h.b16 %v221
    %v300 = vunpack.c.l.b16 %v222
    %v301 = vunpack.c.h.b16 %v222
    %v302 = vunpack.c.l.b16 %v223
    %v303 = vunpack.c.h.b16 %v223
    %v304 = vunpack.c.l.b16 %v224
    %v305 = vunpack.c.h.b16 %v224
    %v306 = vunpack.c.l.b16 %v225
    %v307 = vunpack.c.h.b16 %v225
    %v308 = vunpack.c.l.b16 %v226
    %v309 = vunpack.c.h.b16 %v226
    %v310 = vunpack.c.l.b16 %v227
    %v311 = vunpack.c.h.b16 %v227
    %v312 = vunpack.c.l.b16 %v228
    %v313 = vunpack.c.h.b16 %v228
    %v314 = vunpack.c.l.b16 %v229
    %v315 = vunpack.c.h.b16 %v229
    %v316 = vunpack.c.l.b16 %v230
    %v317 = vunpack.c.h.b16 %v230
    %v318 = vunpack.c.l.b16 %v231
    %v319 = vunpack.c.h.b16 %v231
    %v320 = vunpack.c.l.b16 %v232
    %v321 = vunpack.c.h.b16 %v232
    %v322 = vunpack.c.l.b16 %v233
    %v323 = vunpack.c.h.b16 %v233
    %v324 = vunpack.c.l.b16 %v234
    %v325 = vunpack.c.h.b16 %v234
    %v326 = vunpack.c.l.b16 %v235
    %v327 = vunpack.c.h.b16 %v235
    %v328 = vunpack.c.l.b16 %v236
    %v329 = vunpack.c.h.b16 %v236
    %v330 = vunpack.c.l.b16 %v237
    %v331 = vunpack.c.h.b16 %v237
    %v332 = vunpack.c.l.b16 %v238
    %v333 = vunpack.c.h.b16 %v238
    %v334 = vunpack.c.l.b16 %v239
    %v335 = vunpack.c.h.b16 %v239
    %v336 = vunpack.c.l.b16 %v240
    %v337 = vunpack.c.h.b16 %v240
    %v338 = vunpack.c.l.b16 %v241
    %v339 = vunpack.c.h.b16 %v241
    %v340 = vunpack.c.l.b16 %v242
    %v341 = vunpack.c.h.b16 %v242
    %v342 = vunpack.c.l.b16 %v243
    %v343 = vunpack.c.h.b16 %v243
    %v344 = vunpack.c.l.b16 %v244
    %v345 = vunpack.c.h.b16 %v244
    %v346 = vunpack.c.l.b16 %v245
    %v347 = vunpack.c.h.b16 %v245
    %v348 = vpack.c.b16 %v286, %v284
    %v349 = vpack.c.b16 %v287, %v285
    %v350 = vpack.c.b16 %v290, %v288
    %v351 = vpack.c.b16 %v291, %v289
    %v352 = vpack.c.b16 %v294, %v292
    %v353 = vpack.c.b16 %v295, %v293
    %v354 = vpack.c.b16 %v298, %v296
    %v355 = vpack.c.b16 %v299, %v297
    %v356 = vpack.c.b16 %v302, %v300
    %v357 = vpack.c.b16 %v303, %v301
    %v358 = vpack.c.b16 %v306, %v304
    %v359 = vpack.c.b16 %v307, %v305
    %v360 = vpack.c.b16 %v310, %v308
    %v361 = vpack.c.b16 %v311, %v309
    %v362 = vpack.c.b16 %v314, %v312
    %v363 = vpack.c.b16 %v315, %v313
    %v364 = vpack.c.b16 %v318, %v316
    %v365 = vpack.c.b16 %v319, %v317
    %v366 = vpack.c.b16 %v322, %v320
    %v367 = vpack.c.b16 %v323, %v321
    %v368 = vpack.c.b16 %v326, %v324
    %v369 = vpack.c.b16 %v327, %v325
    %v370 = vpack.c.b16 %v330, %v328
    %v371 = vpack.c.b16 %v331, %v329
    %v372 = vpack.c.b16 %v334, %v332
    %v373 = vpack.c.b16 %v335, %v333
    %v374 = vpack.c.b16 %v338, %v336
    %v375 = vpack.c.b16 %v339, %v337
    %v376 = vpack.c.b16 %v342, %v340
    %v377 = vpack.c.b16 %v343, %v341
    %v378 = vpack.c.b16 %v346, %v344
    %v379 = vpack.c.b16 %v347, %v345
    %412 = vmatpush.bf16.msra.mxu0 %v362
    %413 = vmatpush.bf16.msra.mxu0 %v360
    %414 = vmatpush.bf16.msra.mxu0 %v358
    %415 = vmatpush.bf16.msra.mxu0 %v356
    %416 = vmatpush.bf16.msra.mxu0 %v354
    %417 = vmatpush.bf16.msra.mxu0 %v352
    %418 = vmatpush.bf16.msra.mxu0 %v350
    %419 = vmatpush.bf16.msra.mxu0 %v348
    %420 = vmatmul.bf16.gmra.mxu0 %v212
    %v421 = vpop.f32.mrf.mxu0
    %v422 = vadd.f32 %v248, %v421
    %v423 = vpop.f32.mrf.mxu0
    %424 = vdwg.mxu0
    %425 = vmatpush.bf16.msra.mxu0 %v378
    %426 = vmatpush.bf16.msra.mxu0 %v376
    %427 = vmatpush.bf16.msra.mxu0 %v374
    %428 = vmatpush.bf16.msra.mxu0 %v372
    %429 = vmatpush.bf16.msra.mxu0 %v370
    %430 = vmatpush.bf16.msra.mxu0 %v368
    %431 = vmatpush.bf16.msra.mxu0 %v366
    %432 = vmatpush.bf16.msra.mxu0 %v364
    %433 = vmatmul.bf16.gmra.mxu0 %v213
    %v434 = vpop.f32.mrf.mxu0
    %v435 = vadd.f32 %v422, %v434
    %v436 = vpop.f32.mrf.mxu0
    %437 = vdwg.mxu0
    %438 = vmatpush.bf16.msra.mxu0 %v363
    %439 = vmatpush.bf16.msra.mxu0 %v361
    %440 = vmatpush.bf16.msra.mxu0 %v359
    %441 = vmatpush.bf16.msra.mxu0 %v357
    %442 = vmatpush.bf16.msra.mxu0 %v355
    %443 = vmatpush.bf16.msra.mxu0 %v353
    %444 = vmatpush.bf16.msra.mxu0 %v351
    %445 = vmatpush.bf16.msra.mxu0 %v349
    %446 = vmatmul.bf16.gmra.mxu0 %v212
    %v447 = vpop.f32.mrf.mxu0
    %v448 = vadd.f32 %v249, %v447
    %v449 = vpop.f32.mrf.mxu0
    %450 = vdwg.mxu0
    %451 = vmatpush.bf16.msra.mxu0 %v379
    %452 = vmatpush.bf16.msra.mxu0 %v377
    %453 = vmatpush.bf16.msra.mxu0 %v375
    %454 = vmatpush.bf16.msra.mxu0 %v373
    %455 = vmatpush.bf16.msra.mxu0 %v371
    %456 = vmatpush.bf16.msra.mxu0 %v369
    %457 = vmatpush.bf16.msra.mxu0 %v367
    %458 = vmatpush.bf16.msra.mxu0 %v365
    %459 = vmatmul.bf16.gmra.mxu0 %v213
    %v460 = vpop.f32.mrf.mxu0
    %v461 = vadd.f32 %v448, %v460
    %v462 = vpop.f32.mrf.mxu0
    %463 = vdwg.mxu0
    %v464 = vpack.c.bf16 %v461, %v435
    %v465 = vunpack.c.l.bf16 %v464
    %v466 = vunpack.c.h.bf16 %v464
    %v467 = vmax.f32 %v465, 0.0
    %v468 = vmax.f32 %v466, 0.0
    %v469 = vpack.c.bf16 %v467, %v467
    %v470 = vpack.c.bf16 %v468, %v468
    %v471 = vld [vmem:[#allocation10] sm:$0xff]
    %v472 = vld [vmem:[#allocation10 + $0x8] sm:$0xff]
    %v473 = vld [vmem:[#allocation10 + $0x10] sm:$0xff]
    %v474 = vld [vmem:[#allocation10 + $0x18] sm:$0xff]
    %v475 = vld [vmem:[#allocation10 + $0x20] sm:$0xff]
    %v476 = vld [vmem:[#allocation10 + $0x28] sm:$0xff]
    %v477 = vld [vmem:[#allocation10 + $0x30] sm:$0xff]
    %v478 = vld [vmem:[#allocation10 + $0x38] sm:$0xff]
    %v479 = vld [vmem:[#allocation10 + $0x40] sm:$0xff]
    %v480 = vld [vmem:[#allocation10 + $0x48] sm:$0xff]
    %v481 = vld [vmem:[#allocation10 + $0x50] sm:$0xff]
    %v482 = vld [vmem:[#allocation10 + $0x58] sm:$0xff]
    %v483 = vld [vmem:[#allocation10 + $0x60] sm:$0xff]
    %v484 = vld [vmem:[#allocation10 + $0x68] sm:$0xff]
    %v485 = vld [vmem:[#allocation10 + $0x70] sm:$0xff]
    %v486 = vld [vmem:[#allocation10 + $0x78] sm:$0xff]
    %v487 = vld [vmem:[#allocation10 + $0x80] sm:$0xff]
    %v488 = vld [vmem:[#allocation10 + $0x88] sm:$0xff]
    %v489 = vld [vmem:[#allocation10 + $0x90] sm:$0xff]
    %v490 = vld [vmem:[#allocation10 + $0x98] sm:$0xff]
    %v491 = vld [vmem:[#allocation10 + $0xa0] sm:$0xff]
    %v492 = vld [vmem:[#allocation10 + $0xa8] sm:$0xff]
    %v493 = vld [vmem:[#allocation10 + $0xb0] sm:$0xff]
    %v494 = vld [vmem:[#allocation10 + $0xb8] sm:$0xff]
    %v495 = vld [vmem:[#allocation10 + $0xc0] sm:$0xff]
    %v496 = vld [vmem:[#allocation10 + $0xc8] sm:$0xff]
    %v497 = vld [vmem:[#allocation10 + $0xd0] sm:$0xff]
    %v498 = vld [vmem:[#allocation10 + $0xd8] sm:$0xff]
    %v499 = vld [vmem:[#allocation10 + $0xe0] sm:$0xff]
    %v500 = vld [vmem:[#allocation10 + $0xe8] sm:$0xff]
    %v501 = vld [vmem:[#allocation10 + $0xf0] sm:$0xff]
    %v502 = vld [vmem:[#allocation10 + $0xf8] sm:$0xff]
    %v503 = vld [vmem:[%s6] sm:$0x3]
    %v505 = vperm.slane %v503, 0
    %v506 = vperm.slane %v503, 1
    %v541 = vunpack.c.l.b16 %v471
    %v542 = vunpack.c.h.b16 %v471
    %v543 = vunpack.c.l.b16 %v472
    %v544 = vunpack.c.h.b16 %v472
    %v545 = vunpack.c.l.b16 %v473
    %v546 = vunpack.c.h.b16 %v473
    %v547 = vunpack.c.l.b16 %v474
    %v548 = vunpack.c.h.b16 %v474
    %v549 = vunpack.c.l.b16 %v475
    %v550 = vunpack.c.h.b16 %v475
    %v551 = vunpack.c.l.b16 %v476
    %v552 = vunpack.c.h.b16 %v476
    %v553 = vunpack.c.l.b16 %v477
    %v554 = vunpack.c.h.b16 %v477
    %v555 = vunpack.c.l.b16 %v478
    %v556 = vunpack.c.h.b16 %v478
    %v557 = vunpack.c.l.b16 %v479
    %v558 = vunpack.c.h.b16 %v479
    %v559 = vunpack.c.l.b16 %v480
    %v560 = vunpack.c.h.b16 %v480
    %v561 = vunpack.c.l.b16 %v481
    %v562 = vunpack.c.h.b16 %v481
    %v563 = vunpack.c.l.b16 %v482
    %v564 = vunpack.c.h.b16 %v482
    %v565 = vunpack.c.l.b16 %v483
    %v566 = vunpack.c.h.b16 %v483
    %v567 = vunpack.c.l.b16 %v484
    %v568 = vunpack.c.h.b16 %v484
    %v569 = vunpack.c.l.b16 %v485
    %v570 = vunpack.c.h.b16 %v485
    %v571 = vunpack.c.l.b16 %v486
    %v572 = vunpack.c.h.b16 %v486
    %v573 = vunpack.c.l.b16 %v487
    %v574 = vunpack.c.h.b16 %v487
    %v575 = vunpack.c.l.b16 %v488
    %v576 = vunpack.c.h.b16 %v488
    %v577 = vunpack.c.l.b16 %v489
    %v578 = vunpack.c.h.b16 %v489
    %v579 = vunpack.c.l.b16 %v490
    %v580 = vunpack.c.h.b16 %v490
    %v581 = vunpack.c.l.b16 %v491
    %v582 = vunpack.c.h.b16 %v491
    %v583 = vunpack.c.l.b16 %v492
    %v584 = vunpack.c.h.b16 %v492
    %v585 = vunpack.c.l.b16 %v493
    %v586 = vunpack.c.h.b16 %v493
    %v587 = vunpack.c.l.b16 %v494
    %v588 = vunpack.c.h.b16 %v494
    %v589 = vunpack.c.l.b16 %v495
    %v590 = vunpack.c.h.b16 %v495
    %v591 = vunpack.c.l.b16 %v496
    %v592 = vunpack.c.h.b16 %v496
    %v593 = vunpack.c.l.b16 %v497
    %v594 = vunpack.c.h.b16 %v497
    %v595 = vunpack.c.l.b16 %v498
    %v596 = vunpack.c.h.b16 %v498
    %v597 = vunpack.c.l.b16 %v499
    %v598 = vunpack.c.h.b16 %v499
    %v599 = vunpack.c.l.b16 %v500
    %v600 = vunpack.c.h.b16 %v500
    %v601 = vunpack.c.l.b16 %v501
    %v602 = vunpack.c.h.b16 %v501
    %v603 = vunpack.c.l.b16 %v502
    %v604 = vunpack.c.h.b16 %v502
    %v605 = vpack.c.b16 %v543, %v541
    %v606 = vpack.c.b16 %v544, %v542
    %v607 = vpack.c.b16 %v547, %v545
    %v608 = vpack.c.b16 %v548, %v546
    %v609 = vpack.c.b16 %v551, %v549
    %v610 = vpack.c.b16 %v552, %v550
    %v611 = vpack.c.b16 %v555, %v553
    %v612 = vpack.c.b16 %v556, %v554
    %v613 = vpack.c.b16 %v559, %v557
    %v614 = vpack.c.b16 %v560, %v558
    %v615 = vpack.c.b16 %v563, %v561
    %v616 = vpack.c.b16 %v564, %v562
    %v617 = vpack.c.b16 %v567, %v565
    %v618 = vpack.c.b16 %v568, %v566
    %v619 = vpack.c.b16 %v571, %v569
    %v620 = vpack.c.b16 %v572, %v570
    %v621 = vpack.c.b16 %v575, %v573
    %v622 = vpack.c.b16 %v576, %v574
    %v623 = vpack.c.b16 %v579, %v577
    %v624 = vpack.c.b16 %v580, %v578
    %v625 = vpack.c.b16 %v583, %v581
    %v626 = vpack.c.b16 %v584, %v582
    %v627 = vpack.c.b16 %v587, %v585
    %v628 = vpack.c.b16 %v588, %v586
    %v629 = vpack.c.b16 %v591, %v589
    %v630 = vpack.c.b16 %v592, %v590
    %v631 = vpack.c.b16 %v595, %v593
    %v632 = vpack.c.b16 %v596, %v594
    %v633 = vpack.c.b16 %v599, %v597
    %v634 = vpack.c.b16 %v600, %v598
    %v635 = vpack.c.b16 %v603, %v601
    %v636 = vpack.c.b16 %v604, %v602
    %669 = vmatpush.bf16.msra.mxu0 %v619
    %670 = vmatpush.bf16.msra.mxu0 %v617
    %671 = vmatpush.bf16.msra.mxu0 %v615
    %672 = vmatpush.bf16.msra.mxu0 %v613
    %673 = vmatpush.bf16.msra.mxu0 %v611
    %674 = vmatpush.bf16.msra.mxu0 %v609
    %675 = vmatpush.bf16.msra.mxu0 %v607
    %676 = vmatpush.bf16.msra.mxu0 %v605
    %677 = vmatmul.bf16.gmra.mxu0 %v469
    %v678 = vpop.f32.mrf.mxu0
    %v679 = vadd.f32 %v505, %v678
    %v680 = vpop.f32.mrf.mxu0
    %681 = vdwg.mxu0
    %682 = vmatpush.bf16.msra.mxu0 %v635
    %683 = vmatpush.bf16.msra.mxu0 %v633
    %684 = vmatpush.bf16.msra.mxu0 %v631
    %685 = vmatpush.bf16.msra.mxu0 %v629
    %686 = vmatpush.bf16.msra.mxu0 %v627
    %687 = vmatpush.bf16.msra.mxu0 %v625
    %688 = vmatpush.bf16.msra.mxu0 %v623
    %689 = vmatpush.bf16.msra.mxu0 %v621
    %690 = vmatmul.bf16.gmra.mxu0 %v470
    %v691 = vpop.f32.mrf.mxu0
    %v692 = vadd.f32 %v679, %v691
    %v693 = vpop.f32.mrf.mxu0
    %694 = vdwg.mxu0
    %695 = vmatpush.bf16.msra.mxu0 %v620
    %696 = vmatpush.bf16.msra.mxu0 %v618
    %697 = vmatpush.bf16.msra.mxu0 %v616
    %698 = vmatpush.bf16.msra.mxu0 %v614
    %699 = vmatpush.bf16.msra.mxu0 %v612
    %700 = vmatpush.bf16.msra.mxu0 %v610
    %701 = vmatpush.bf16.msra.mxu0 %v608
    %702 = vmatpush.bf16.msra.mxu0 %v606
    %703 = vmatmul.bf16.gmra.mxu0 %v469
    %v704 = vpop.f32.mrf.mxu0
    %v705 = vadd.f32 %v506, %v704
    %v706 = vpop.f32.mrf.mxu0
    %707 = vdwg.mxu0
    %708 = vmatpush.bf16.msra.mxu0 %v636
    %709 = vmatpush.bf16.msra.mxu0 %v634
    %710 = vmatpush.bf16.msra.mxu0 %v632
    %711 = vmatpush.bf16.msra.mxu0 %v630
    %712 = vmatpush.bf16.msra.mxu0 %v628
    %713 = vmatpush.bf16.msra.mxu0 %v626
    %714 = vmatpush.bf16.msra.mxu0 %v624
    %715 = vmatpush.bf16.msra.mxu0 %v622
    %716 = vmatmul.bf16.gmra.mxu0 %v470
    %v717 = vpop.f32.mrf.mxu0
    %v718 = vadd.f32 %v705, %v717
    %v719 = vpop.f32.mrf.mxu0
    %720 = vdwg.mxu0
    %v721 = vpack.c.bf16 %v718, %v692
    %v722 = vunpack.c.l.bf16 %v721
    %v723 = vunpack.c.h.bf16 %v721
    %v724 = vmax.f32 %v722, 0.0
    %v725 = vmax.f32 %v723, 0.0
    %v726 = vpack.c.bf16 %v724, %v724
    %v727 = vpack.c.bf16 %v725, %v725
    %v728 = vld [vmem:[#allocation11] sm:$0xff]
    %v729 = vld [vmem:[#allocation11 + $0x8] sm:$0xff]
    %v730 = vld [vmem:[#allocation11 + $0x10] sm:$0xff]
    %v731 = vld [vmem:[#allocation11 + $0x18] sm:$0xff]
    %v732 = vld [vmem:[#allocation11 + $0x20] sm:$0xff]
    %v733 = vld [vmem:[#allocation11 + $0x28] sm:$0xff]
    %v734 = vld [vmem:[#allocation11 + $0x30] sm:$0xff]
    %v735 = vld [vmem:[#allocation11 + $0x38] sm:$0xff]
    %v736 = vld [vmem:[#allocation11 + $0x40] sm:$0xff]
    %v737 = vld [vmem:[#allocation11 + $0x48] sm:$0xff]
    %v738 = vld [vmem:[#allocation11 + $0x50] sm:$0xff]
    %v739 = vld [vmem:[#allocation11 + $0x58] sm:$0xff]
    %v740 = vld [vmem:[#allocation11 + $0x60] sm:$0xff]
    %v741 = vld [vmem:[#allocation11 + $0x68] sm:$0xff]
    %v742 = vld [vmem:[#allocation11 + $0x70] sm:$0xff]
    %v743 = vld [vmem:[#allocation11 + $0x78] sm:$0xff]
    %v744 = vld [vmem:[#allocation11 + $0x80] sm:$0xff]
    %v745 = vld [vmem:[#allocation11 + $0x88] sm:$0xff]
    %v746 = vld [vmem:[#allocation11 + $0x90] sm:$0xff]
    %v747 = vld [vmem:[#allocation11 + $0x98] sm:$0xff]
    %v748 = vld [vmem:[#allocation11 + $0xa0] sm:$0xff]
    %v749 = vld [vmem:[#allocation11 + $0xa8] sm:$0xff]
    %v750 = vld [vmem:[#allocation11 + $0xb0] sm:$0xff]
    %v751 = vld [vmem:[#allocation11 + $0xb8] sm:$0xff]
    %v752 = vld [vmem:[#allocation11 + $0xc0] sm:$0xff]
    %v753 = vld [vmem:[#allocation11 + $0xc8] sm:$0xff]
    %v754 = vld [vmem:[#allocation11 + $0xd0] sm:$0xff]
    %v755 = vld [vmem:[#allocation11 + $0xd8] sm:$0xff]
    %v756 = vld [vmem:[#allocation11 + $0xe0] sm:$0xff]
    %v757 = vld [vmem:[#allocation11 + $0xe8] sm:$0xff]
    %v758 = vld [vmem:[#allocation11 + $0xf0] sm:$0xff]
    %v759 = vld [vmem:[#allocation11 + $0xf8] sm:$0xff]
    %v760 = vld [vmem:[%s8] sm:$0x3]
    %v762 = vperm.slane %v760, 0
    %v763 = vperm.slane %v760, 1
    %v798 = vunpack.c.l.b16 %v728
    %v799 = vunpack.c.h.b16 %v728
    %v800 = vunpack.c.l.b16 %v729
    %v801 = vunpack.c.h.b16 %v729
    %v802 = vunpack.c.l.b16 %v730
    %v803 = vunpack.c.h.b16 %v730
    %v804 = vunpack.c.l.b16 %v731
    %v805 = vunpack.c.h.b16 %v731
    %v806 = vunpack.c.l.b16 %v732
    %v807 = vunpack.c.h.b16 %v732
    %v808 = vunpack.c.l.b16 %v733
    %v809 = vunpack.c.h.b16 %v733
    %v810 = vunpack.c.l.b16 %v734
    %v811 = vunpack.c.h.b16 %v734
    %v812 = vunpack.c.l.b16 %v735
    %v813 = vunpack.c.h.b16 %v735
    %v814 = vunpack.c.l.b16 %v736
    %v815 = vunpack.c.h.b16 %v736
    %v816 = vunpack.c.l.b16 %v737
    %v817 = vunpack.c.h.b16 %v737
    %v818 = vunpack.c.l.b16 %v738
    %v819 = vunpack.c.h.b16 %v738
    %v820 = vunpack.c.l.b16 %v739
    %v821 = vunpack.c.h.b16 %v739
    %v822 = vunpack.c.l.b16 %v740
    %v823 = vunpack.c.h.b16 %v740
    %v824 = vunpack.c.l.b16 %v741
    %v825 = vunpack.c.h.b16 %v741
    %v826 = vunpack.c.l.b16 %v742
    %v827 = vunpack.c.h.b16 %v742
    %v828 = vunpack.c.l.b16 %v743
    %v829 = vunpack.c.h.b16 %v743
    %v830 = vunpack.c.l.b16 %v744
    %v831 = vunpack.c.h.b16 %v744
    %v832 = vunpack.c.l.b16 %v745
    %v833 = vunpack.c.h.b16 %v745
    %v834 = vunpack.c.l.b16 %v746
    %v835 = vunpack.c.h.b16 %v746
    %v836 = vunpack.c.l.b16 %v747
    %v837 = vunpack.c.h.b16 %v747
    %v838 = vunpack.c.l.b16 %v748
    %v839 = vunpack.c.h.b16 %v748
    %v840 = vunpack.c.l.b16 %v749
    %v841 = vunpack.c.h.b16 %v749
    %v842 = vunpack.c.l.b16 %v750
    %v843 = vunpack.c.h.b16 %v750
    %v844 = vunpack.c.l.b16 %v751
    %v845 = vunpack.c.h.b16 %v751
    %v846 = vunpack.c.l.b16 %v752
    %v847 = vunpack.c.h.b16 %v752
    %v848 = vunpack.c.l.b16 %v753
    %v849 = vunpack.c.h.b16 %v753
    %v850 = vunpack.c.l.b16 %v754
    %v851 = vunpack.c.h.b16 %v754
    %v852 = vunpack.c.l.b16 %v755
    %v853 = vunpack.c.h.b16 %v755
    %v854 = vunpack.c.l.b16 %v756
    %v855 = vunpack.c.h.b16 %v756
    %v856 = vunpack.c.l.b16 %v757
    %v857 = vunpack.c.h.b16 %v757
    %v858 = vunpack.c.l.b16 %v758
    %v859 = vunpack.c.h.b16 %v758
    %v860 = vunpack.c.l.b16 %v759
    %v861 = vunpack.c.h.b16 %v759
    %v862 = vpack.c.b16 %v800, %v798
    %v863 = vpack.c.b16 %v801, %v799
    %v864 = vpack.c.b16 %v804, %v802
    %v865 = vpack.c.b16 %v805, %v803
    %v866 = vpack.c.b16 %v808, %v806
    %v867 = vpack.c.b16 %v809, %v807
    %v868 = vpack.c.b16 %v812, %v810
    %v869 = vpack.c.b16 %v813, %v811
    %v870 = vpack.c.b16 %v816, %v814
    %v871 = vpack.c.b16 %v817, %v815
    %v872 = vpack.c.b16 %v820, %v818
    %v873 = vpack.c.b16 %v821, %v819
    %v874 = vpack.c.b16 %v824, %v822
    %v875 = vpack.c.b16 %v825, %v823
    %v876 = vpack.c.b16 %v828, %v826
    %v877 = vpack.c.b16 %v829, %v827
    %v878 = vpack.c.b16 %v832, %v830
    %v879 = vpack.c.b16 %v833, %v831
    %v880 = vpack.c.b16 %v836, %v834
    %v881 = vpack.c.b16 %v837, %v835
    %v882 = vpack.c.b16 %v840, %v838
    %v883 = vpack.c.b16 %v841, %v839
    %v884 = vpack.c.b16 %v844, %v842
    %v885 = vpack.c.b16 %v845, %v843
    %v886 = vpack.c.b16 %v848, %v846
    %v887 = vpack.c.b16 %v849, %v847
    %v888 = vpack.c.b16 %v852, %v850
    %v889 = vpack.c.b16 %v853, %v851
    %v890 = vpack.c.b16 %v856, %v854
    %v891 = vpack.c.b16 %v857, %v855
    %v892 = vpack.c.b16 %v860, %v858
    %v893 = vpack.c.b16 %v861, %v859
    %926 = vmatpush.bf16.msra.mxu0 %v876
    %927 = vmatpush.bf16.msra.mxu0 %v874
    %928 = vmatpush.bf16.msra.mxu0 %v872
    %929 = vmatpush.bf16.msra.mxu0 %v870
    %930 = vmatpush.bf16.msra.mxu0 %v868
    %931 = vmatpush.bf16.msra.mxu0 %v866
    %932 = vmatpush.bf16.msra.mxu0 %v864
    %933 = vmatpush.bf16.msra.mxu0 %v862
    %934 = vmatmul.bf16.gmra.mxu0 %v726
    %v935 = vpop.f32.mrf.mxu0
    %v936 = vadd.f32 %v762, %v935
    %v937 = vpop.f32.mrf.mxu0
    %938 = vdwg.mxu0
    %939 = vmatpush.bf16.msra.mxu0 %v892
    %940 = vmatpush.bf16.msra.mxu0 %v890
    %941 = vmatpush.bf16.msra.mxu0 %v888
    %942 = vmatpush.bf16.msra.mxu0 %v886
    %943 = vmatpush.bf16.msra.mxu0 %v884
    %944 = vmatpush.bf16.msra.mxu0 %v882
    %945 = vmatpush.bf16.msra.mxu0 %v880
    %946 = vmatpush.bf16.msra.mxu0 %v878
    %947 = vmatmul.bf16.gmra.mxu0 %v727
    %v948 = vpop.f32.mrf.mxu0
    %v949 = vadd.f32 %v936, %v948
    %v950 = vpop.f32.mrf.mxu0
    %951 = vdwg.mxu0
    %952 = vmatpush.bf16.msra.mxu0 %v877
    %953 = vmatpush.bf16.msra.mxu0 %v875
    %954 = vmatpush.bf16.msra.mxu0 %v873
    %955 = vmatpush.bf16.msra.mxu0 %v871
    %956 = vmatpush.bf16.msra.mxu0 %v869
    %957 = vmatpush.bf16.msra.mxu0 %v867
    %958 = vmatpush.bf16.msra.mxu0 %v865
    %959 = vmatpush.bf16.msra.mxu0 %v863
    %960 = vmatmul.bf16.gmra.mxu0 %v726
    %v961 = vpop.f32.mrf.mxu0
    %v962 = vadd.f32 %v763, %v961
    %v963 = vpop.f32.mrf.mxu0
    %964 = vdwg.mxu0
    %965 = vmatpush.bf16.msra.mxu0 %v893
    %966 = vmatpush.bf16.msra.mxu0 %v891
    %967 = vmatpush.bf16.msra.mxu0 %v889
    %968 = vmatpush.bf16.msra.mxu0 %v887
    %969 = vmatpush.bf16.msra.mxu0 %v885
    %970 = vmatpush.bf16.msra.mxu0 %v883
    %971 = vmatpush.bf16.msra.mxu0 %v881
    %972 = vmatpush.bf16.msra.mxu0 %v879
    %973 = vmatmul.bf16.gmra.mxu0 %v727
    %v974 = vpop.f32.mrf.mxu0
    %v975 = vadd.f32 %v962, %v974
    %v976 = vpop.f32.mrf.mxu0
    %977 = vdwg.mxu0
    %v978 = vpack.c.bf16 %v975, %v949
    %v979 = vunpack.c.l.bf16 %v978
    %v980 = vunpack.c.h.bf16 %v978
    %v981 = vmax.f32 %v979, 0.0
    %v982 = vmax.f32 %v980, 0.0
    %v983 = vpack.c.bf16 %v981, %v981
    %v984 = vpack.c.bf16 %v982, %v982
    %v985 = vld [vmem:[#allocation13] sm:$0xf]
    %v986 = vld [vmem:[#allocation13 + $0x4] sm:$0xf]
    %v987 = vld [vmem:[#allocation13 + $0x8] sm:$0xf]
    %v988 = vld [vmem:[#allocation13 + $0xc] sm:$0xf]
    %v989 = vld [vmem:[#allocation13 + $0x10] sm:$0xf]
    %v990 = vld [vmem:[#allocation13 + $0x14] sm:$0xf]
    %v991 = vld [vmem:[#allocation13 + $0x18] sm:$0xf]
    %v992 = vld [vmem:[#allocation13 + $0x1c] sm:$0xf]
    %v993 = vld [vmem:[#allocation13 + $0x20] sm:$0xf]
    %v994 = vld [vmem:[#allocation13 + $0x24] sm:$0xf]
    %v995 = vld [vmem:[#allocation13 + $0x28] sm:$0xf]
    %v996 = vld [vmem:[#allocation13 + $0x2c] sm:$0xf]
    %v997 = vld [vmem:[#allocation13 + $0x30] sm:$0xf]
    %v998 = vld [vmem:[#allocation13 + $0x34] sm:$0xf]
    %v999 = vld [vmem:[#allocation13 + $0x38] sm:$0xf]
    %v1000 = vld [vmem:[#allocation13 + $0x3c] sm:$0xf]
    %v1001 = vld [vmem:[#allocation13 + $0x40] sm:$0xf]
    %v1002 = vld [vmem:[#allocation13 + $0x44] sm:$0xf]
    %v1003 = vld [vmem:[#allocation13 + $0x48] sm:$0xf]
    %v1004 = vld [vmem:[#allocation13 + $0x4c] sm:$0xf]
    %v1005 = vld [vmem:[#allocation13 + $0x50] sm:$0xf]
    %v1006 = vld [vmem:[#allocation13 + $0x54] sm:$0xf]
    %v1007 = vld [vmem:[#allocation13 + $0x58] sm:$0xf]
    %v1008 = vld [vmem:[#allocation13 + $0x5c] sm:$0xf]
    %v1009 = vld [vmem:[#allocation13 + $0x60] sm:$0xf]
    %v1010 = vld [vmem:[#allocation13 + $0x64] sm:$0xf]
    %v1011 = vld [vmem:[#allocation13 + $0x68] sm:$0xf]
    %v1012 = vld [vmem:[#allocation13 + $0x6c] sm:$0xf]
    %v1013 = vld [vmem:[#allocation13 + $0x70] sm:$0xf]
    %v1014 = vld [vmem:[#allocation13 + $0x74] sm:$0xf]
    %v1015 = vld [vmem:[#allocation13 + $0x78] sm:$0xf]
    %v1016 = vld [vmem:[#allocation13 + $0x7c] sm:$0xf]
    %v1017 = vld [vmem:[%s10] sm:$0x1]
    %v1019 = vperm.slane %v1017, 0
    %v1053 = vunpack.c.l.b16 %v985
    %v1054 = vunpack.c.l.b16 %v986
    %v1055 = vunpack.c.l.b16 %v987
    %v1056 = vunpack.c.l.b16 %v988
    %v1057 = vunpack.c.l.b16 %v989
    %v1058 = vunpack.c.l.b16 %v990
    %v1059 = vunpack.c.l.b16 %v991
    %v1060 = vunpack.c.l.b16 %v992
    %v1061 = vunpack.c.l.b16 %v993
    %v1062 = vunpack.c.l.b16 %v994
    %v1063 = vunpack.c.l.b16 %v995
    %v1064 = vunpack.c.l.b16 %v996
    %v1065 = vunpack.c.l.b16 %v997
    %v1066 = vunpack.c.l.b16 %v998
    %v1067 = vunpack.c.l.b16 %v999
    %v1068 = vunpack.c.l.b16 %v1000
    %v1069 = vunpack.c.l.b16 %v1001
    %v1070 = vunpack.c.l.b16 %v1002
    %v1071 = vunpack.c.l.b16 %v1003
    %v1072 = vunpack.c.l.b16 %v1004
    %v1073 = vunpack.c.l.b16 %v1005
    %v1074 = vunpack.c.l.b16 %v1006
    %v1075 = vunpack.c.l.b16 %v1007
    %v1076 = vunpack.c.l.b16 %v1008
    %v1077 = vunpack.c.l.b16 %v1009
    %v1078 = vunpack.c.l.b16 %v1010
    %v1079 = vunpack.c.l.b16 %v1011
    %v1080 = vunpack.c.l.b16 %v1012
    %v1081 = vunpack.c.l.b16 %v1013
    %v1082 = vunpack.c.l.b16 %v1014
    %v1083 = vunpack.c.l.b16 %v1015
    %v1084 = vunpack.c.l.b16 %v1016
    %v1085 = vpack.c.b16 %v1054, %v1053
    %v1086 = vpack.c.b16 %v1056, %v1055
    %v1087 = vpack.c.b16 %v1058, %v1057
    %v1088 = vpack.c.b16 %v1060, %v1059
    %v1089 = vpack.c.b16 %v1062, %v1061
    %v1090 = vpack.c.b16 %v1064, %v1063
    %v1091 = vpack.c.b16 %v1066, %v1065
    %v1092 = vpack.c.b16 %v1068, %v1067
    %v1093 = vpack.c.b16 %v1070, %v1069
    %v1094 = vpack.c.b16 %v1072, %v1071
    %v1095 = vpack.c.b16 %v1074, %v1073
    %v1096 = vpack.c.b16 %v1076, %v1075
    %v1097 = vpack.c.b16 %v1078, %v1077
    %v1098 = vpack.c.b16 %v1080, %v1079
    %v1099 = vpack.c.b16 %v1082, %v1081
    %v1100 = vpack.c.b16 %v1084, %v1083
    %1117 = vmatpush.bf16.msra.mxu0 %v1092
    %1118 = vmatpush.bf16.msra.mxu0 %v1091
    %1119 = vmatpush.bf16.msra.mxu0 %v1090
    %1120 = vmatpush.bf16.msra.mxu0 %v1089
    %1121 = vmatpush.bf16.msra.mxu0 %v1088
    %1122 = vmatpush.bf16.msra.mxu0 %v1087
    %1123 = vmatpush.bf16.msra.mxu0 %v1086
    %1124 = vmatpush.bf16.msra.mxu0 %v1085
    %1125 = vmatmul.bf16.gmra.mxu0 %v983
    %v1126 = vpop.f32.mrf.mxu0
    %v1127 = vadd.f32 %v1019, %v1126
    %v1128 = vpop.f32.mrf.mxu0
    %1129 = vdwg.mxu0
    %1130 = vmatpush.bf16.msra.mxu0 %v1100
    %1131 = vmatpush.bf16.msra.mxu0 %v1099
    %1132 = vmatpush.bf16.msra.mxu0 %v1098
    %1133 = vmatpush.bf16.msra.mxu0 %v1097
    %1134 = vmatpush.bf16.msra.mxu0 %v1096
    %1135 = vmatpush.bf16.msra.mxu0 %v1095
    %1136 = vmatpush.bf16.msra.mxu0 %v1094
    %1137 = vmatpush.bf16.msra.mxu0 %v1093
    %1138 = vmatmul.bf16.gmra.mxu0 %v984
    %v1139 = vpop.f32.mrf.mxu0
    %v1140 = vadd.f32 %v1127, %v1139
    %v1141 = vpop.f32.mrf.mxu0
    %1142 = vdwg.mxu0
    %v1143 = vpack.c.bf16 %v1140, %v1140
    %1144 = vst [vmem:[#allocation14] sm:$0xf] %v1143
    // Predicated region
    $region74: #{tpu_custom_call.1} parent=1 // pred_check
      _
    $region75: #{tpu_custom_call.1} parent=1 // pred_check_branch
      %1146 = sbr.rel (0) target = $region77
    $region76: #{tpu_custom_call.1} parent=1 // pred_region
      %1148 = vsyncadd [#allocation4], 0
      %s1150 = sshll.u32 [#allocation14], 4
      %s1151 = int_to_ptr.vmem [resolvable:$true] %s1150
      %s1152 = sshll.u32 %s11, 4
      %s1153 = int_to_ptr.hbm [resolvable:$true] %s1152
      %1155 = dma.vmem_to_hbm [thread:$0]  %s1151, 64, %s1153, [#allocation4]
    $region77: #{tpu_custom_call.1} parent=1 // pred_fallthru
      _
    // Predicated region
    $region78: #{tpu_custom_call.1} parent=1 // pred_check
      _
    $region79: #{tpu_custom_call.1} parent=1 // pred_check_branch
      %1157 = sbr.rel (0) target = $region81
    $region80: #{tpu_custom_call.1} parent=1 // pred_region
      %1159 = dma.done [#allocation4], 64
    $region81: #{tpu_custom_call.1} parent=1 // pred_fallthru
      _
    %1160 = vsyncpa [#allocation3], 1
    %1161 = vsyncpa [#allocation6], 1
    %1162 = vsyncpa [#allocation9], 1
    %1163 = vsyncpa [#allocation12], 1
    %1164 = vsyncpa [#allocation4], 1

// kernel: tpu_custom_call.1
$region0: #{tpu_custom_call.1}
  #allocation0 [shape = 'u32[]', space=smem, size = 0x4, offset = 0x4, fixed_abs, tag = 'smem constant byte address 0x4 - core index']
  #allocation1 [shape = 'u32[72,128]{1,0:T(1,128)}', space=vmem, size = 0x9000, scoped, tag = 'internal scratch']
  %s0 = inlined_call_operand.hbm [shape: f32[8,32], index: 0, kind: input, shape index: {}]
  %s1 = inlined_call_operand.hbm [shape: bf16[32,256], index: 1, kind: input, shape index: {}]
  %s2 = inlined_call_operand.hbm [shape: f32[1,256], index: 2, kind: input, shape index: {}]
  %s3 = inlined_call_operand.hbm [shape: bf16[256,256], index: 3, kind: input, shape index: {}]
  %s4 = inlined_call_operand.vmem [shape: f32[1,256], index: 4, kind: input, shape index: {}]
  %s5 = inlined_call_operand.hbm [shape: bf16[256,256], index: 5, kind: input, shape index: {}]
  %s6 = inlined_call_operand.vmem [shape: f32[1,256], index: 6, kind: input, shape index: {}]
  %s7 = inlined_call_operand.hbm [shape: bf16[256,256], index: 7, kind: input, shape index: {}]
  %s8 = inlined_call_operand.vmem [shape: f32[1,256], index: 8, kind: input, shape index: {}]
  %s9 = inlined_call_operand.hbm [shape: bf16[256,128], index: 9, kind: input, shape index: {}]
  %s10 = inlined_call_operand.vmem [shape: f32[1,128], index: 10, kind: input, shape index: {}]
  %s11 = inlined_call_operand.hbm [shape: bf16[8,128], index: 11, kind: output, shape index: {}]
  %s12 = sld [smem:[#allocation0]]
  $region82: #{tpu_custom_call.1} parent=0
    _
  %s14 = ssub.s32 1, %s12
  %s15 = scalar_select 0, %s14, %s12
  $region1: #{tpu_custom_call.1} parent=0
    #allocation2 [shape = 'u8[4096]{0}', space=vmem, size = 0x1000, scoped, tag = 'input window, operand 0, single buffered']
    #allocation3 [shape = 's32[1]{0}', space=sflag, size = 0x4, scoped, tag = 'scoped memory for tpu_custom_call.1']
    #allocation4 [shape = 's32[1]{0}', space=sflag, size = 0x4, scoped, tag = 'scoped memory for tpu_custom_call.1']
    #allocation5 [shape = 'u8[16384]{0}', space=vmem, size = 0x4000, scoped, tag = 'input window, operand 1, single buffered']
    #allocation6 [shape = 's32[1]{0}', space=sflag, size = 0x4, scoped, tag = 'scoped memory for tpu_custom_call.1']
    #allocation7 [shape = 'u8[1024]{0}', space=vmem, size = 0x400, scoped, tag = 'input window, operand 2, single buffered']
    #allocation8 [shape = 'u8[131072]{0}', space=vmem, size = 0x20000, scoped, tag = 'input window, operand 3, single buffered']
    #allocation9 [shape = 's32[1]{0}', space=sflag, size = 0x4, scoped, tag = 'scoped memory for tpu_custom_call.1']
    #allocation10 [shape = 'u8[131072]{0}', space=vmem, size = 0x20000, scoped, tag = 'input window, operand 5, single buffered']
    #allocation11 [shape = 'u8[131072]{0}', space=vmem, size = 0x20000, scoped, tag = 'input window, operand 7, single buffered']
    #allocation12 [shape = 's32[1]{0}', space=sflag, size = 0x4, scoped, tag = 'scoped memory for tpu_custom_call.1']
    #allocation13 [shape = 'u8[65536]{0}', space=vmem, size = 0x10000, scoped, tag = 'input window, operand 9, single buffered']
    #allocation14 [shape = 'u8[2048]{0}', space=vmem, size = 0x800, scoped, tag = 'output window, operand 0, single buffered']
    %16 = vsyncpa [#allocation3], 0
    %17 = vsyncpa [#allocation6], 0
    %18 = vsyncpa [#allocation9], 0
    %19 = vsyncpa [#allocation12], 0
    %20 = vsyncpa [#allocation4], 0
    // Predicated region
    $region2: #{tpu_custom_call.1} parent=1 // pred_check
      _
    $region3: #{tpu_custom_call.1} parent=1 // pred_check_branch
      %22 = sbr.rel (0) target = $region5
    $region4: #{tpu_custom_call.1} parent=1 // pred_region
      %24 = vsyncadd [#allocation3], 0
      %s26 = sshll.u32 %s0, 4
      %s27 = int_to_ptr.hbm [resolvable:$true] %s26
      %s28 = sshll.u32 [#allocation2], 4
      %s29 = int_to_ptr.vmem [resolvable:$true] %s28
      %31 = dma.hbm_to_vmem [thread:$0]  %s27, 128, %s29, [#allocation3]
    $region5: #{tpu_custom_call.1} parent=1 // pred_fallthru
      _
    // Predicated region
    $region6: #{tpu_custom_call.1} parent=1 // pred_check
      _
    $region7: #{tpu_custom_call.1} parent=1 // pred_check_branch
      %33 = sbr.rel (0) target = $region9
    $region8: #{tpu_custom_call.1} parent=1 // pred_region
      %35 = vsyncadd [#allocation6], 0
      %s36 = sshll.u32 %s1, 4
      %s37 = int_to_ptr.hbm [resolvable:$true] %s36
      %s38 = sshll.u32 [#allocation5], 4
      %s39 = int_to_ptr.vmem [resolvable:$true] %s38
      %44 = dma.hbm_to_vmem [thread:$0]  %s37, 512, %s39, [#allocation6], 128, 128, 8
    $region9: #{tpu_custom_call.1} parent=1 // pred_fallthru
      _
    // Predicated region
    $region10: #{tpu_custom_call.1} parent=1 // pred_check
      _
    $region11: #{tpu_custom_call.1} parent=1 // pred_check_branch
      %46 = sbr.rel (0) target = $region13
    $region12: #{tpu_custom_call.1} parent=1 // pred_region
      %48 = vsyncadd [#allocation6], 0
      %s50 = sshll.u32 %s2, 4
      %s51 = int_to_ptr.hbm [resolvable:$true] %s50
      %s52 = sshll.u32 [#allocation7], 4
      %s53 = int_to_ptr.vmem [resolvable:$true] %s52
      %55 = dma.hbm_to_vmem [thread:$0]  %s51, 32, %s53, [#allocation6]
    $region13: #{tpu_custom_call.1} parent=1 // pred_fallthru
      _
    // Predicated region
    $region14: #{tpu_custom_call.1} parent=1 // pred_check
      _
    $region15: #{tpu_custom_call.1} parent=1 // pred_check_branch
      %57 = sbr.rel (0) target = $region17
    $region16: #{tpu_custom_call.1} parent=1 // pred_region
      %59 = vsyncadd [#allocation9], 0
      %s60 = sshll.u32 %s3, 4
      %s61 = int_to_ptr.hbm [resolvable:$true] %s60
      %s62 = sshll.u32 [#allocation8], 4
      %s63 = int_to_ptr.vmem [resolvable:$true] %s62
      %68 = dma.hbm_to_vmem [thread:$0]  %s61, 4096, %s63, [#allocation9], 128, 128, 8
    $region17: #{tpu_custom_call.1} parent=1 // pred_fallthru
      _
    // Predicated region
    $region18: #{tpu_custom_call.1} parent=1 // pred_check
      _
    $region19: #{tpu_custom_call.1} parent=1 // pred_check_branch
      %70 = sbr.rel (0) target = $region21
    $region20: #{tpu_custom_call.1} parent=1 // pred_region
      _
    $region21: #{tpu_custom_call.1} parent=1 // pred_fallthru
      _
    // Predicated region
    $region22: #{tpu_custom_call.1} parent=1 // pred_check
      _
    $region23: #{tpu_custom_call.1} parent=1 // pred_check_branch
      %72 = sbr.rel (0) target = $region25
    $region24: #{tpu_custom_call.1} parent=1 // pred_region
      %74 = vsyncadd [#allocation9], 0
      %s75 = sshll.u32 %s5, 4
      %s76 = int_to_ptr.hbm [resolvable:$true] %s75
      %s77 = sshll.u32 [#allocation10], 4
      %s78 = int_to_ptr.vmem [resolvable:$true] %s77
      %83 = dma.hbm_to_vmem [thread:$0]  %s76, 4096, %s78, [#allocation9], 128, 128, 8
    $region25: #{tpu_custom_call.1} parent=1 // pred_fallthru
      _
    // Predicated region
    $region26: #{tpu_custom_call.1} parent=1 // pred_check
      _
    $region27: #{tpu_custom_call.1} parent=1 // pred_check_branch
      %85 = sbr.rel (0) target = $region29
    $region28: #{tpu_custom_call.1} parent=1 // pred_region
      _
    $region29: #{tpu_custom_call.1} parent=1 // pred_fallthru
      _
    // Predicated region
    $region30: #{tpu_custom_call.1} parent=1 // pred_check
      _
    $region31: #{tpu_custom_call.1} parent=1 // pred_check_branch
      %87 = sbr.rel (0) target = $region33
    $region32: #{tpu_custom_call.1} parent=1 // pred_region
      %89 = vsyncadd [#allocation12], 0
      %s90 = sshll.u32 %s7, 4
      %s91 = int_to_ptr.hbm [resolvable:$true] %s90
      %s92 = sshll.u32 [#allocation11], 4
      %s93 = int_to_ptr.vmem [resolvable:$true] %s92
      %98 = dma.hbm_to_vmem [thread:$0]  %s91, 4096, %s93, [#allocation12], 128, 128, 8
    $region33: #{tpu_custom_call.1} parent=1 // pred_fallthru
      _
    // Predicated region
    $region34: #{tpu_custom_call.1} parent=1 // pred_check
      _
    $region35: #{tpu_custom_call.1} parent=1 // pred_check_branch
      %100 = sbr.rel (0) target = $region37
    $region36: #{tpu_custom_call.1} parent=1 // pred_region
      _
    $region37: #{tpu_custom_call.1} parent=1 // pred_fallthru
      _
    // Predicated region
    $region38: #{tpu_custom_call.1} parent=1 // pred_check
      _
    $region39: #{tpu_custom_call.1} parent=1 // pred_check_branch
      %102 = sbr.rel (0) target = $region41
    $region40: #{tpu_custom_call.1} parent=1 // pred_region
      %104 = vsyncadd [#allocation12], 0
      %s105 = sshll.u32 %s9, 4
      %s106 = int_to_ptr.hbm [resolvable:$true] %s105
      %s107 = sshll.u32 [#allocation13], 4
      %s108 = int_to_ptr.vmem [resolvable:$true] %s107
      %113 = dma.hbm_to_vmem [thread:$0]  %s106, 2048, %s108, [#allocation12], 64, 64, 4
    $region41: #{tpu_custom_call.1} parent=1 // pred_fallthru
      _
    // Predicated region
    $region42: #{tpu_custom_call.1} parent=1 // pred_check
      _
    $region43: #{tpu_custom_call.1} parent=1 // pred_check_branch
      %115 = sbr.rel (0) target = $region45
    $region44: #{tpu_custom_call.1} parent=1 // pred_region
      _
    $region45: #{tpu_custom_call.1} parent=1 // pred_fallthru
      _
    // Predicated region
    $region46: #{tpu_custom_call.1} parent=1 // pred_check
      _
    $region47: #{tpu_custom_call.1} parent=1 // pred_check_branch
      %117 = sbr.rel (0) target = $region49
    $region48: #{tpu_custom_call.1} parent=1 // pred_region
      %119 = dma.done [#allocation3], 128
    $region49: #{tpu_custom_call.1} parent=1 // pred_fallthru
      _
    // Predicated region
    $region50: #{tpu_custom_call.1} parent=1 // pred_check
      _
    $region51: #{tpu_custom_call.1} parent=1 // pred_check_branch
      %121 = sbr.rel (0) target = $region53
    $region52: #{tpu_custom_call.1} parent=1 // pred_region
      %123 = dma.done [#allocation6], 512
    $region53: #{tpu_custom_call.1} parent=1 // pred_fallthru
      _
    // Predicated region
    $region54: #{tpu_custom_call.1} parent=1 // pred_check
      _
    $region55: #{tpu_custom_call.1} parent=1 // pred_check_branch
      %125 = sbr.rel (0) target = $region57
    $region56: #{tpu_custom_call.1} parent=1 // pred_region
      %127 = dma.done [#allocation6], 32
    $region57: #{tpu_custom_call.1} parent=1 // pred_fallthru
      _
    // Predicated region
    $region58: #{tpu_custom_call.1} parent=1 // pred_check
      _
    $region59: #{tpu_custom_call.1} parent=1 // pred_check_branch
      %129 = sbr.rel (0) target = $region61
    $region60: #{tpu_custom_call.1} parent=1 // pred_region
      %131 = dma.done [#allocation9], 4096
    $region61: #{tpu_custom_call.1} parent=1 // pred_fallthru
      _
    // Predicated region
    $region62: #{tpu_custom_call.1} parent=1 // pred_check
      _
    $region63: #{tpu_custom_call.1} parent=1 // pred_check_branch
      %133 = sbr.rel (0) target = $region65
    $region64: #{tpu_custom_call.1} parent=1 // pred_region
      %135 = dma.done [#allocation9], 4096
    $region65: #{tpu_custom_call.1} parent=1 // pred_fallthru
      _
    // Predicated region
    $region66: #{tpu_custom_call.1} parent=1 // pred_check
      _
    $region67: #{tpu_custom_call.1} parent=1 // pred_check_branch
      %137 = sbr.rel (0) target = $region69
    $region68: #{tpu_custom_call.1} parent=1 // pred_region
      %139 = dma.done [#allocation12], 4096
    $region69: #{tpu_custom_call.1} parent=1 // pred_fallthru
      _
    // Predicated region
    $region70: #{tpu_custom_call.1} parent=1 // pred_check
      _
    $region71: #{tpu_custom_call.1} parent=1 // pred_check_branch
      %141 = sbr.rel (0) target = $region73
    $region72: #{tpu_custom_call.1} parent=1 // pred_region
      %143 = dma.done [#allocation12], 2048
    $region73: #{tpu_custom_call.1} parent=1 // pred_fallthru
      _
    %v145 = vld [vmem:[#allocation2] sm:$0xff]
    %v146 = vpack.c.bf16 %v145, %v145
    %v147 = vld [vmem:[#allocation5] sm:$0xff]
    %v148 = vld [vmem:[#allocation5 + $0x8] sm:$0xff]
    %v149 = vld [vmem:[#allocation5 + $0x10] sm:$0xff]
    %v150 = vld [vmem:[#allocation5 + $0x18] sm:$0xff]
    %v151 = vld [vmem:[#allocation7] sm:$0x3]
    %v153 = vperm.slane %v151, 0
    %v154 = vperm.slane %v151, 1
    %v161 = vunpack.c.l.b16 %v147
    %v162 = vunpack.c.h.b16 %v147
    %v163 = vunpack.c.l.b16 %v148
    %v164 = vunpack.c.h.b16 %v148
    %v165 = vunpack.c.l.b16 %v149
    %v166 = vunpack.c.h.b16 %v149
    %v167 = vunpack.c.l.b16 %v150
    %v168 = vunpack.c.h.b16 %v150
    %v169 = vpack.c.b16 %v163, %v161
    %v170 = vpack.c.b16 %v164, %v162
    %v171 = vpack.c.b16 %v167, %v165
    %v172 = vpack.c.b16 %v168, %v166
    %vm177 = vcmask 261120
    %v179 = vsel %vm177, %v146, 0
    %181 = vmatpush.bf16.msra.mxu0 0
    %182 = vmatpush.bf16.msra.mxu0 0
    %183 = vmatpush.bf16.msra.mxu0 0
    %184 = vmatpush.bf16.msra.mxu0 0
    %185 = vmatpush.bf16.msra.mxu0 0
    %186 = vmatpush.bf16.msra.mxu0 0
    %187 = vmatpush.bf16.msra.mxu0 %v171
    %188 = vmatpush.bf16.msra.mxu0 %v169
    %189 = vmatmul.bf16.gmra.mxu0 %v179
    %v190 = vpop.f32.mrf.mxu0
    %v191 = vadd.f32 %v153, %v190
    %v192 = vpop.f32.mrf.mxu0
    %193 = vdwg.mxu0
    %194 = vmatpush.bf16.msra.mxu0 0
    %195 = vmatpush.bf16.msra.mxu0 0
    %196 = vmatpush.bf16.msra.mxu0 0
    %197 = vmatpush.bf16.msra.mxu0 0
    %198 = vmatpush.bf16.msra.mxu0 0
    %199 = vmatpush.bf16.msra.mxu0 0
    %200 = vmatpush.bf16.msra.mxu0 %v172
    %201 = vmatpush.bf16.msra.mxu0 %v170
    %202 = vmatmul.bf16.gmra.mxu0 %v179
    %v203 = vpop.f32.mrf.mxu0
    %v204 = vadd.f32 %v154, %v203
    %v205 = vpop.f32.mrf.mxu0
    %206 = vdwg.mxu0
    %v207 = vpack.c.bf16 %v204, %v191
    %v208 = vunpack.c.l.bf16 %v207
    %v209 = vunpack.c.h.bf16 %v207
    %v210 = vmax.f32 %v208, 0.0
    %v211 = vmax.f32 %v209, 0.0
    %v212 = vpack.c.bf16 %v210, %v210
    %v213 = vpack.c.bf16 %v211, %v211
    %v214 = vld [vmem:[#allocation8] sm:$0xff]
    %v215 = vld [vmem:[#allocation8 + $0x8] sm:$0xff]
    %v216 = vld [vmem:[#allocation8 + $0x10] sm:$0xff]
    %v217 = vld [vmem:[#allocation8 + $0x18] sm:$0xff]
    %v218 = vld [vmem:[#allocation8 + $0x20] sm:$0xff]
    %v219 = vld [vmem:[#allocation8 + $0x28] sm:$0xff]
    %v220 = vld [vmem:[#allocation8 + $0x30] sm:$0xff]
    %v221 = vld [vmem:[#allocation8 + $0x38] sm:$0xff]
    %v222 = vld [vmem:[#allocation8 + $0x40] sm:$0xff]
    %v223 = vld [vmem:[#allocation8 + $0x48] sm:$0xff]
    %v224 = vld [vmem:[#allocation8 + $0x50] sm:$0xff]
    %v225 = vld [vmem:[#allocation8 + $0x58] sm:$0xff]
    %v226 = vld [vmem:[#allocation8 + $0x60] sm:$0xff]
    %v227 = vld [vmem:[#allocation8 + $0x68] sm:$0xff]
    %v228 = vld [vmem:[#allocation8 + $0x70] sm:$0xff]
    %v229 = vld [vmem:[#allocation8 + $0x78] sm:$0xff]
    %v230 = vld [vmem:[#allocation8 + $0x80] sm:$0xff]
    %v231 = vld [vmem:[#allocation8 + $0x88] sm:$0xff]
    %v232 = vld [vmem:[#allocation8 + $0x90] sm:$0xff]
    %v233 = vld [vmem:[#allocation8 + $0x98] sm:$0xff]
    %v234 = vld [vmem:[#allocation8 + $0xa0] sm:$0xff]
    %v235 = vld [vmem:[#allocation8 + $0xa8] sm:$0xff]
    %v236 = vld [vmem:[#allocation8 + $0xb0] sm:$0xff]
    %v237 = vld [vmem:[#allocation8 + $0xb8] sm:$0xff]
    %v238 = vld [vmem:[#allocation8 + $0xc0] sm:$0xff]
    %v239 = vld [vmem:[#allocation8 + $0xc8] sm:$0xff]
    %v240 = vld [vmem:[#allocation8 + $0xd0] sm:$0xff]
    %v241 = vld [vmem:[#allocation8 + $0xd8] sm:$0xff]
    %v242 = vld [vmem:[#allocation8 + $0xe0] sm:$0xff]
    %v243 = vld [vmem:[#allocation8 + $0xe8] sm:$0xff]
    %v244 = vld [vmem:[#allocation8 + $0xf0] sm:$0xff]
    %v245 = vld [vmem:[#allocation8 + $0xf8] sm:$0xff]
    %v246 = vld [vmem:[%s4] sm:$0x3]
    %v248 = vperm.slane %v246, 0
    %v249 = vperm.slane %v246, 1
    %v284 = vunpack.c.l.b16 %v214
    %v285 = vunpack.c.h.b16 %v214
    %v286 = vunpack.c.l.b16 %v215
    %v287 = vunpack.c.h.b16 %v215
    %v288 = vunpack.c.l.b16 %v216
    %v289 = vunpack.c.h.b16 %v216
    %v290 = vunpack.c.l.b16 %v217
    %v291 = vunpack.c.h.b16 %v217
    %v292 = vunpack.c.l.b16 %v218
    %v293 = vunpack.c.h.b16 %v218
    %v294 = vunpack.c.l.b16 %v219
    %v295 = vunpack.c.h.b16 %v219
    %v296 = vunpack.c.l.b16 %v220
    %v297 = vunpack.c.h.b16 %v220
    %v298 = vunpack.c.l.b16 %v221
    %v299 = vunpack.c.h.b16 %v221
    %v300 = vunpack.c.l.b16 %v222
    %v301 = vunpack.c.h.b16 %v222
    %v302 = vunpack.c.l.b16 %v223
    %v303 = vunpack.c.h.b16 %v223
    %v304 = vunpack.c.l.b16 %v224
    %v305 = vunpack.c.h.b16 %v224
    %v306 = vunpack.c.l.b16 %v225
    %v307 = vunpack.c.h.b16 %v225
    %v308 = vunpack.c.l.b16 %v226
    %v309 = vunpack.c.h.b16 %v226
    %v310 = vunpack.c.l.b16 %v227
    %v311 = vunpack.c.h.b16 %v227
    %v312 = vunpack.c.l.b16 %v228
    %v313 = vunpack.c.h.b16 %v228
    %v314 = vunpack.c.l.b16 %v229
    %v315 = vunpack.c.h.b16 %v229
    %v316 = vunpack.c.l.b16 %v230
    %v317 = vunpack.c.h.b16 %v230
    %v318 = vunpack.c.l.b16 %v231
    %v319 = vunpack.c.h.b16 %v231
    %v320 = vunpack.c.l.b16 %v232
    %v321 = vunpack.c.h.b16 %v232
    %v322 = vunpack.c.l.b16 %v233
    %v323 = vunpack.c.h.b16 %v233
    %v324 = vunpack.c.l.b16 %v234
    %v325 = vunpack.c.h.b16 %v234
    %v326 = vunpack.c.l.b16 %v235
    %v327 = vunpack.c.h.b16 %v235
    %v328 = vunpack.c.l.b16 %v236
    %v329 = vunpack.c.h.b16 %v236
    %v330 = vunpack.c.l.b16 %v237
    %v331 = vunpack.c.h.b16 %v237
    %v332 = vunpack.c.l.b16 %v238
    %v333 = vunpack.c.h.b16 %v238
    %v334 = vunpack.c.l.b16 %v239
    %v335 = vunpack.c.h.b16 %v239
    %v336 = vunpack.c.l.b16 %v240
    %v337 = vunpack.c.h.b16 %v240
    %v338 = vunpack.c.l.b16 %v241
    %v339 = vunpack.c.h.b16 %v241
    %v340 = vunpack.c.l.b16 %v242
    %v341 = vunpack.c.h.b16 %v242
    %v342 = vunpack.c.l.b16 %v243
    %v343 = vunpack.c.h.b16 %v243
    %v344 = vunpack.c.l.b16 %v244
    %v345 = vunpack.c.h.b16 %v244
    %v346 = vunpack.c.l.b16 %v245
    %v347 = vunpack.c.h.b16 %v245
    %v348 = vpack.c.b16 %v286, %v284
    %v349 = vpack.c.b16 %v287, %v285
    %v350 = vpack.c.b16 %v290, %v288
    %v351 = vpack.c.b16 %v291, %v289
    %v352 = vpack.c.b16 %v294, %v292
    %v353 = vpack.c.b16 %v295, %v293
    %v354 = vpack.c.b16 %v298, %v296
    %v355 = vpack.c.b16 %v299, %v297
    %v356 = vpack.c.b16 %v302, %v300
    %v357 = vpack.c.b16 %v303, %v301
    %v358 = vpack.c.b16 %v306, %v304
    %v359 = vpack.c.b16 %v307, %v305
    %v360 = vpack.c.b16 %v310, %v308
    %v361 = vpack.c.b16 %v311, %v309
    %v362 = vpack.c.b16 %v314, %v312
    %v363 = vpack.c.b16 %v315, %v313
    %v364 = vpack.c.b16 %v318, %v316
    %v365 = vpack.c.b16 %v319, %v317
    %v366 = vpack.c.b16 %v322, %v320
    %v367 = vpack.c.b16 %v323, %v321
    %v368 = vpack.c.b16 %v326, %v324
    %v369 = vpack.c.b16 %v327, %v325
    %v370 = vpack.c.b16 %v330, %v328
    %v371 = vpack.c.b16 %v331, %v329
    %v372 = vpack.c.b16 %v334, %v332
    %v373 = vpack.c.b16 %v335, %v333
    %v374 = vpack.c.b16 %v338, %v336
    %v375 = vpack.c.b16 %v339, %v337
    %v376 = vpack.c.b16 %v342, %v340
    %v377 = vpack.c.b16 %v343, %v341
    %v378 = vpack.c.b16 %v346, %v344
    %v379 = vpack.c.b16 %v347, %v345
    %412 = vmatpush.bf16.msra.mxu0 %v362
    %413 = vmatpush.bf16.msra.mxu0 %v360
    %414 = vmatpush.bf16.msra.mxu0 %v358
    %415 = vmatpush.bf16.msra.mxu0 %v356
    %416 = vmatpush.bf16.msra.mxu0 %v354
    %417 = vmatpush.bf16.msra.mxu0 %v352
    %418 = vmatpush.bf16.msra.mxu0 %v350
    %419 = vmatpush.bf16.msra.mxu0 %v348
    %420 = vmatmul.bf16.gmra.mxu0 %v212
    %v421 = vpop.f32.mrf.mxu0
    %v422 = vadd.f32 %v248, %v421
    %v423 = vpop.f32.mrf.mxu0
    %424 = vdwg.mxu0
    %425 = vmatpush.bf16.msra.mxu0 %v378
    %426 = vmatpush.bf16.msra.mxu0 %v376
    %427 = vmatpush.bf16.msra.mxu0 %v374
    %428 = vmatpush.bf16.msra.mxu0 %v372
    %429 = vmatpush.bf16.msra.mxu0 %v370
    %430 = vmatpush.bf16.msra.mxu0 %v368
    %431 = vmatpush.bf16.msra.mxu0 %v366
    %432 = vmatpush.bf16.msra.mxu0 %v364
    %433 = vmatmul.bf16.gmra.mxu0 %v213
    %v434 = vpop.f32.mrf.mxu0
    %v435 = vadd.f32 %v422, %v434
    %v436 = vpop.f32.mrf.mxu0
    %437 = vdwg.mxu0
    %438 = vmatpush.bf16.msra.mxu0 %v363
    %439 = vmatpush.bf16.msra.mxu0 %v361
    %440 = vmatpush.bf16.msra.mxu0 %v359
    %441 = vmatpush.bf16.msra.mxu0 %v357
    %442 = vmatpush.bf16.msra.mxu0 %v355
    %443 = vmatpush.bf16.msra.mxu0 %v353
    %444 = vmatpush.bf16.msra.mxu0 %v351
    %445 = vmatpush.bf16.msra.mxu0 %v349
    %446 = vmatmul.bf16.gmra.mxu0 %v212
    %v447 = vpop.f32.mrf.mxu0
    %v448 = vadd.f32 %v249, %v447
    %v449 = vpop.f32.mrf.mxu0
    %450 = vdwg.mxu0
    %451 = vmatpush.bf16.msra.mxu0 %v379
    %452 = vmatpush.bf16.msra.mxu0 %v377
    %453 = vmatpush.bf16.msra.mxu0 %v375
    %454 = vmatpush.bf16.msra.mxu0 %v373
    %455 = vmatpush.bf16.msra.mxu0 %v371
    %456 = vmatpush.bf16.msra.mxu0 %v369
    %457 = vmatpush.bf16.msra.mxu0 %v367
    %458 = vmatpush.bf16.msra.mxu0 %v365
    %459 = vmatmul.bf16.gmra.mxu0 %v213
    %v460 = vpop.f32.mrf.mxu0
    %v461 = vadd.f32 %v448, %v460
    %v462 = vpop.f32.mrf.mxu0
    %463 = vdwg.mxu0
    %v464 = vpack.c.bf16 %v461, %v435
    %v465 = vunpack.c.l.bf16 %v464
    %v466 = vunpack.c.h.bf16 %v464
    %v467 = vmax.f32 %v465, 0.0
    %v468 = vmax.f32 %v466, 0.0
    %v469 = vpack.c.bf16 %v467, %v467
    %v470 = vpack.c.bf16 %v468, %v468
    %v471 = vld [vmem:[#allocation10] sm:$0xff]
    %v472 = vld [vmem:[#allocation10 + $0x8] sm:$0xff]
    %v473 = vld [vmem:[#allocation10 + $0x10] sm:$0xff]
    %v474 = vld [vmem:[#allocation10 + $0x18] sm:$0xff]
    %v475 = vld [vmem:[#allocation10 + $0x20] sm:$0xff]
    %v476 = vld [vmem:[#allocation10 + $0x28] sm:$0xff]
    %v477 = vld [vmem:[#allocation10 + $0x30] sm:$0xff]
    %v478 = vld [vmem:[#allocation10 + $0x38] sm:$0xff]
    %v479 = vld [vmem:[#allocation10 + $0x40] sm:$0xff]
    %v480 = vld [vmem:[#allocation10 + $0x48] sm:$0xff]
    %v481 = vld [vmem:[#allocation10 + $0x50] sm:$0xff]
    %v482 = vld [vmem:[#allocation10 + $0x58] sm:$0xff]
    %v483 = vld [vmem:[#allocation10 + $0x60] sm:$0xff]
    %v484 = vld [vmem:[#allocation10 + $0x68] sm:$0xff]
    %v485 = vld [vmem:[#allocation10 + $0x70] sm:$0xff]
    %v486 = vld [vmem:[#allocation10 + $0x78] sm:$0xff]
    %v487 = vld [vmem:[#allocation10 + $0x80] sm:$0xff]
    %v488 = vld [vmem:[#allocation10 + $0x88] sm:$0xff]
    %v489 = vld [vmem:[#allocation10 + $0x90] sm:$0xff]
    %v490 = vld [vmem:[#allocation10 + $0x98] sm:$0xff]
    %v491 = vld [vmem:[#allocation10 + $0xa0] sm:$0xff]
    %v492 = vld [vmem:[#allocation10 + $0xa8] sm:$0xff]
    %v493 = vld [vmem:[#allocation10 + $0xb0] sm:$0xff]
    %v494 = vld [vmem:[#allocation10 + $0xb8] sm:$0xff]
    %v495 = vld [vmem:[#allocation10 + $0xc0] sm:$0xff]
    %v496 = vld [vmem:[#allocation10 + $0xc8] sm:$0xff]
    %v497 = vld [vmem:[#allocation10 + $0xd0] sm:$0xff]
    %v498 = vld [vmem:[#allocation10 + $0xd8] sm:$0xff]
    %v499 = vld [vmem:[#allocation10 + $0xe0] sm:$0xff]
    %v500 = vld [vmem:[#allocation10 + $0xe8] sm:$0xff]
    %v501 = vld [vmem:[#allocation10 + $0xf0] sm:$0xff]
    %v502 = vld [vmem:[#allocation10 + $0xf8] sm:$0xff]
    %v503 = vld [vmem:[%s6] sm:$0x3]
    %v505 = vperm.slane %v503, 0
    %v506 = vperm.slane %v503, 1
    %v541 = vunpack.c.l.b16 %v471
    %v542 = vunpack.c.h.b16 %v471
    %v543 = vunpack.c.l.b16 %v472
    %v544 = vunpack.c.h.b16 %v472
    %v545 = vunpack.c.l.b16 %v473
    %v546 = vunpack.c.h.b16 %v473
    %v547 = vunpack.c.l.b16 %v474
    %v548 = vunpack.c.h.b16 %v474
    %v549 = vunpack.c.l.b16 %v475
    %v550 = vunpack.c.h.b16 %v475
    %v551 = vunpack.c.l.b16 %v476
    %v552 = vunpack.c.h.b16 %v476
    %v553 = vunpack.c.l.b16 %v477
    %v554 = vunpack.c.h.b16 %v477
    %v555 = vunpack.c.l.b16 %v478
    %v556 = vunpack.c.h.b16 %v478
    %v557 = vunpack.c.l.b16 %v479
    %v558 = vunpack.c.h.b16 %v479
    %v559 = vunpack.c.l.b16 %v480
    %v560 = vunpack.c.h.b16 %v480
    %v561 = vunpack.c.l.b16 %v481
    %v562 = vunpack.c.h.b16 %v481
    %v563 = vunpack.c.l.b16 %v482
    %v564 = vunpack.c.h.b16 %v482
    %v565 = vunpack.c.l.b16 %v483
    %v566 = vunpack.c.h.b16 %v483
    %v567 = vunpack.c.l.b16 %v484
    %v568 = vunpack.c.h.b16 %v484
    %v569 = vunpack.c.l.b16 %v485
    %v570 = vunpack.c.h.b16 %v485
    %v571 = vunpack.c.l.b16 %v486
    %v572 = vunpack.c.h.b16 %v486
    %v573 = vunpack.c.l.b16 %v487
    %v574 = vunpack.c.h.b16 %v487
    %v575 = vunpack.c.l.b16 %v488
    %v576 = vunpack.c.h.b16 %v488
    %v577 = vunpack.c.l.b16 %v489
    %v578 = vunpack.c.h.b16 %v489
    %v579 = vunpack.c.l.b16 %v490
    %v580 = vunpack.c.h.b16 %v490
    %v581 = vunpack.c.l.b16 %v491
    %v582 = vunpack.c.h.b16 %v491
    %v583 = vunpack.c.l.b16 %v492
    %v584 = vunpack.c.h.b16 %v492
    %v585 = vunpack.c.l.b16 %v493
    %v586 = vunpack.c.h.b16 %v493
    %v587 = vunpack.c.l.b16 %v494
    %v588 = vunpack.c.h.b16 %v494
    %v589 = vunpack.c.l.b16 %v495
    %v590 = vunpack.c.h.b16 %v495
    %v591 = vunpack.c.l.b16 %v496
    %v592 = vunpack.c.h.b16 %v496
    %v593 = vunpack.c.l.b16 %v497
    %v594 = vunpack.c.h.b16 %v497
    %v595 = vunpack.c.l.b16 %v498
    %v596 = vunpack.c.h.b16 %v498
    %v597 = vunpack.c.l.b16 %v499
    %v598 = vunpack.c.h.b16 %v499
    %v599 = vunpack.c.l.b16 %v500
    %v600 = vunpack.c.h.b16 %v500
    %v601 = vunpack.c.l.b16 %v501
    %v602 = vunpack.c.h.b16 %v501
    %v603 = vunpack.c.l.b16 %v502
    %v604 = vunpack.c.h.b16 %v502
    %v605 = vpack.c.b16 %v543, %v541
    %v606 = vpack.c.b16 %v544, %v542
    %v607 = vpack.c.b16 %v547, %v545
    %v608 = vpack.c.b16 %v548, %v546
    %v609 = vpack.c.b16 %v551, %v549
    %v610 = vpack.c.b16 %v552, %v550
    %v611 = vpack.c.b16 %v555, %v553
    %v612 = vpack.c.b16 %v556, %v554
    %v613 = vpack.c.b16 %v559, %v557
    %v614 = vpack.c.b16 %v560, %v558
    %v615 = vpack.c.b16 %v563, %v561
    %v616 = vpack.c.b16 %v564, %v562
    %v617 = vpack.c.b16 %v567, %v565
    %v618 = vpack.c.b16 %v568, %v566
    %v619 = vpack.c.b16 %v571, %v569
    %v620 = vpack.c.b16 %v572, %v570
    %v621 = vpack.c.b16 %v575, %v573
    %v622 = vpack.c.b16 %v576, %v574
    %v623 = vpack.c.b16 %v579, %v577
    %v624 = vpack.c.b16 %v580, %v578
    %v625 = vpack.c.b16 %v583, %v581
    %v626 = vpack.c.b16 %v584, %v582
    %v627 = vpack.c.b16 %v587, %v585
    %v628 = vpack.c.b16 %v588, %v586
    %v629 = vpack.c.b16 %v591, %v589
    %v630 = vpack.c.b16 %v592, %v590
    %v631 = vpack.c.b16 %v595, %v593
    %v632 = vpack.c.b16 %v596, %v594
    %v633 = vpack.c.b16 %v599, %v597
    %v634 = vpack.c.b16 %v600, %v598
    %v635 = vpack.c.b16 %v603, %v601
    %v636 = vpack.c.b16 %v604, %v602
    %669 = vmatpush.bf16.msra.mxu0 %v619
    %670 = vmatpush.bf16.msra.mxu0 %v617
    %671 = vmatpush.bf16.msra.mxu0 %v615
    %672 = vmatpush.bf16.msra.mxu0 %v613
    %673 = vmatpush.bf16.msra.mxu0 %v611
    %674 = vmatpush.bf16.msra.mxu0 %v609
    %675 = vmatpush.bf16.msra.mxu0 %v607
    %676 = vmatpush.bf16.msra.mxu0 %v605
    %677 = vmatmul.bf16.gmra.mxu0 %v469
    %v678 = vpop.f32.mrf.mxu0
    %v679 = vadd.f32 %v505, %v678
    %v680 = vpop.f32.mrf.mxu0
    %681 = vdwg.mxu0
    %682 = vmatpush.bf16.msra.mxu0 %v635
    %683 = vmatpush.bf16.msra.mxu0 %v633
    %684 = vmatpush.bf16.msra.mxu0 %v631
    %685 = vmatpush.bf16.msra.mxu0 %v629
    %686 = vmatpush.bf16.msra.mxu0 %v627
    %687 = vmatpush.bf16.msra.mxu0 %v625
    %688 = vmatpush.bf16.msra.mxu0 %v623
    %689 = vmatpush.bf16.msra.mxu0 %v621
    %690 = vmatmul.bf16.gmra.mxu0 %v470
    %v691 = vpop.f32.mrf.mxu0
    %v692 = vadd.f32 %v679, %v691
    %v693 = vpop.f32.mrf.mxu0
    %694 = vdwg.mxu0
    %695 = vmatpush.bf16.msra.mxu0 %v620
    %696 = vmatpush.bf16.msra.mxu0 %v618
    %697 = vmatpush.bf16.msra.mxu0 %v616
    %698 = vmatpush.bf16.msra.mxu0 %v614
    %699 = vmatpush.bf16.msra.mxu0 %v612
    %700 = vmatpush.bf16.msra.mxu0 %v610
    %701 = vmatpush.bf16.msra.mxu0 %v608
    %702 = vmatpush.bf16.msra.mxu0 %v606
    %703 = vmatmul.bf16.gmra.mxu0 %v469
    %v704 = vpop.f32.mrf.mxu0
    %v705 = vadd.f32 %v506, %v704
    %v706 = vpop.f32.mrf.mxu0
    %707 = vdwg.mxu0
    %708 = vmatpush.bf16.msra.mxu0 %v636
    %709 = vmatpush.bf16.msra.mxu0 %v634
    %710 = vmatpush.bf16.msra.mxu0 %v632
    %711 = vmatpush.bf16.msra.mxu0 %v630
    %712 = vmatpush.bf16.msra.mxu0 %v628
    %713 = vmatpush.bf16.msra.mxu0 %v626
    %714 = vmatpush.bf16.msra.mxu0 %v624
    %715 = vmatpush.bf16.msra.mxu0 %v622
    %716 = vmatmul.bf16.gmra.mxu0 %v470
    %v717 = vpop.f32.mrf.mxu0
    %v718 = vadd.f32 %v705, %v717
    %v719 = vpop.f32.mrf.mxu0
    %720 = vdwg.mxu0
    %v721 = vpack.c.bf16 %v718, %v692
    %v722 = vunpack.c.l.bf16 %v721
    %v723 = vunpack.c.h.bf16 %v721
    %v724 = vmax.f32 %v722, 0.0
    %v725 = vmax.f32 %v723, 0.0
    %v726 = vpack.c.bf16 %v724, %v724
    %v727 = vpack.c.bf16 %v725, %v725
    %v728 = vld [vmem:[#allocation11] sm:$0xff]
    %v729 = vld [vmem:[#allocation11 + $0x8] sm:$0xff]
    %v730 = vld [vmem:[#allocation11 + $0x10] sm:$0xff]
    %v731 = vld [vmem:[#allocation11 + $0x18] sm:$0xff]
    %v732 = vld [vmem:[#allocation11 + $0x20] sm:$0xff]
    %v733 = vld [vmem:[#allocation11 + $0x28] sm:$0xff]
    %v734 = vld [vmem:[#allocation11 + $0x30] sm:$0xff]
    %v735 = vld [vmem:[#allocation11 + $0x38] sm:$0xff]
    %v736 = vld [vmem:[#allocation11 + $0x40] sm:$0xff]
    %v737 = vld [vmem:[#allocation11 + $0x48] sm:$0xff]
    %v738 = vld [vmem:[#allocation11 + $0x50] sm:$0xff]
    %v739 = vld [vmem:[#allocation11 + $0x58] sm:$0xff]
    %v740 = vld [vmem:[#allocation11 + $0x60] sm:$0xff]
    %v741 = vld [vmem:[#allocation11 + $0x68] sm:$0xff]
    %v742 = vld [vmem:[#allocation11 + $0x70] sm:$0xff]
    %v743 = vld [vmem:[#allocation11 + $0x78] sm:$0xff]
    %v744 = vld [vmem:[#allocation11 + $0x80] sm:$0xff]
    %v745 = vld [vmem:[#allocation11 + $0x88] sm:$0xff]
    %v746 = vld [vmem:[#allocation11 + $0x90] sm:$0xff]
    %v747 = vld [vmem:[#allocation11 + $0x98] sm:$0xff]
    %v748 = vld [vmem:[#allocation11 + $0xa0] sm:$0xff]
    %v749 = vld [vmem:[#allocation11 + $0xa8] sm:$0xff]
    %v750 = vld [vmem:[#allocation11 + $0xb0] sm:$0xff]
    %v751 = vld [vmem:[#allocation11 + $0xb8] sm:$0xff]
    %v752 = vld [vmem:[#allocation11 + $0xc0] sm:$0xff]
    %v753 = vld [vmem:[#allocation11 + $0xc8] sm:$0xff]
    %v754 = vld [vmem:[#allocation11 + $0xd0] sm:$0xff]
    %v755 = vld [vmem:[#allocation11 + $0xd8] sm:$0xff]
    %v756 = vld [vmem:[#allocation11 + $0xe0] sm:$0xff]
    %v757 = vld [vmem:[#allocation11 + $0xe8] sm:$0xff]
    %v758 = vld [vmem:[#allocation11 + $0xf0] sm:$0xff]
    %v759 = vld [vmem:[#allocation11 + $0xf8] sm:$0xff]
    %v760 = vld [vmem:[%s8] sm:$0x3]
    %v762 = vperm.slane %v760, 0
    %v763 = vperm.slane %v760, 1
    %v798 = vunpack.c.l.b16 %v728
    %v799 = vunpack.c.h.b16 %v728
    %v800 = vunpack.c.l.b16 %v729
    %v801 = vunpack.c.h.b16 %v729
    %v802 = vunpack.c.l.b16 %v730
    %v803 = vunpack.c.h.b16 %v730
    %v804 = vunpack.c.l.b16 %v731
    %v805 = vunpack.c.h.b16 %v731
    %v806 = vunpack.c.l.b16 %v732
    %v807 = vunpack.c.h.b16 %v732
    %v808 = vunpack.c.l.b16 %v733
    %v809 = vunpack.c.h.b16 %v733
    %v810 = vunpack.c.l.b16 %v734
    %v811 = vunpack.c.h.b16 %v734
    %v812 = vunpack.c.l.b16 %v735
    %v813 = vunpack.c.h.b16 %v735
    %v814 = vunpack.c.l.b16 %v736
    %v815 = vunpack.c.h.b16 %v736
    %v816 = vunpack.c.l.b16 %v737
    %v817 = vunpack.c.h.b16 %v737
    %v818 = vunpack.c.l.b16 %v738
    %v819 = vunpack.c.h.b16 %v738
    %v820 = vunpack.c.l.b16 %v739
    %v821 = vunpack.c.h.b16 %v739
    %v822 = vunpack.c.l.b16 %v740
    %v823 = vunpack.c.h.b16 %v740
    %v824 = vunpack.c.l.b16 %v741
    %v825 = vunpack.c.h.b16 %v741
    %v826 = vunpack.c.l.b16 %v742
    %v827 = vunpack.c.h.b16 %v742
    %v828 = vunpack.c.l.b16 %v743
    %v829 = vunpack.c.h.b16 %v743
    %v830 = vunpack.c.l.b16 %v744
    %v831 = vunpack.c.h.b16 %v744
    %v832 = vunpack.c.l.b16 %v745
    %v833 = vunpack.c.h.b16 %v745
    %v834 = vunpack.c.l.b16 %v746
    %v835 = vunpack.c.h.b16 %v746
    %v836 = vunpack.c.l.b16 %v747
    %v837 = vunpack.c.h.b16 %v747
    %v838 = vunpack.c.l.b16 %v748
    %v839 = vunpack.c.h.b16 %v748
    %v840 = vunpack.c.l.b16 %v749
    %v841 = vunpack.c.h.b16 %v749
    %v842 = vunpack.c.l.b16 %v750
    %v843 = vunpack.c.h.b16 %v750
    %v844 = vunpack.c.l.b16 %v751
    %v845 = vunpack.c.h.b16 %v751
    %v846 = vunpack.c.l.b16 %v752
    %v847 = vunpack.c.h.b16 %v752
    %v848 = vunpack.c.l.b16 %v753
    %v849 = vunpack.c.h.b16 %v753
    %v850 = vunpack.c.l.b16 %v754
    %v851 = vunpack.c.h.b16 %v754
    %v852 = vunpack.c.l.b16 %v755
    %v853 = vunpack.c.h.b16 %v755
    %v854 = vunpack.c.l.b16 %v756
    %v855 = vunpack.c.h.b16 %v756
    %v856 = vunpack.c.l.b16 %v757
    %v857 = vunpack.c.h.b16 %v757
    %v858 = vunpack.c.l.b16 %v758
    %v859 = vunpack.c.h.b16 %v758
    %v860 = vunpack.c.l.b16 %v759
    %v861 = vunpack.c.h.b16 %v759
    %v862 = vpack.c.b16 %v800, %v798
    %v863 = vpack.c.b16 %v801, %v799
    %v864 = vpack.c.b16 %v804, %v802
    %v865 = vpack.c.b16 %v805, %v803
    %v866 = vpack.c.b16 %v808, %v806
    %v867 = vpack.c.b16 %v809, %v807
    %v868 = vpack.c.b16 %v812, %v810
    %v869 = vpack.c.b16 %v813, %v811
    %v870 = vpack.c.b16 %v816, %v814
    %v871 = vpack.c.b16 %v817, %v815
    %v872 = vpack.c.b16 %v820, %v818
    %v873 = vpack.c.b16 %v821, %v819
    %v874 = vpack.c.b16 %v824, %v822
    %v875 = vpack.c.b16 %v825, %v823
    %v876 = vpack.c.b16 %v828, %v826
    %v877 = vpack.c.b16 %v829, %v827
    %v878 = vpack.c.b16 %v832, %v830
    %v879 = vpack.c.b16 %v833, %v831
    %v880 = vpack.c.b16 %v836, %v834
    %v881 = vpack.c.b16 %v837, %v835
    %v882 = vpack.c.b16 %v840, %v838
    %v883 = vpack.c.b16 %v841, %v839
    %v884 = vpack.c.b16 %v844, %v842
    %v885 = vpack.c.b16 %v845, %v843
    %v886 = vpack.c.b16 %v848, %v846
    %v887 = vpack.c.b16 %v849, %v847
    %v888 = vpack.c.b16 %v852, %v850
    %v889 = vpack.c.b16 %v853, %v851
    %v890 = vpack.c.b16 %v856, %v854
    %v891 = vpack.c.b16 %v857, %v855
    %v892 = vpack.c.b16 %v860, %v858
    %v893 = vpack.c.b16 %v861, %v859
    %926 = vmatpush.bf16.msra.mxu0 %v876
    %927 = vmatpush.bf16.msra.mxu0 %v874
    %928 = vmatpush.bf16.msra.mxu0 %v872
    %929 = vmatpush.bf16.msra.mxu0 %v870
    %930 = vmatpush.bf16.msra.mxu0 %v868
    %931 = vmatpush.bf16.msra.mxu0 %v866
    %932 = vmatpush.bf16.msra.mxu0 %v864
    %933 = vmatpush.bf16.msra.mxu0 %v862
    %934 = vmatmul.bf16.gmra.mxu0 %v726
    %v935 = vpop.f32.mrf.mxu0
    %v936 = vadd.f32 %v762, %v935
    %v937 = vpop.f32.mrf.mxu0
    %938 = vdwg.mxu0
    %939 = vmatpush.bf16.msra.mxu0 %v892
    %940 = vmatpush.bf16.msra.mxu0 %v890
    %941 = vmatpush.bf16.msra.mxu0 %v888
    %942 = vmatpush.bf16.msra.mxu0 %v886
    %943 = vmatpush.bf16.msra.mxu0 %v884
    %944 = vmatpush.bf16.msra.mxu0 %v882
    %945 = vmatpush.bf16.msra.mxu0 %v880
    %946 = vmatpush.bf16.msra.mxu0 %v878
    %947 = vmatmul.bf16.gmra.mxu0 %v727
    %v948 = vpop.f32.mrf.mxu0
    %v949 = vadd.f32 %v936, %v948
    %v950 = vpop.f32.mrf.mxu0
    %951 = vdwg.mxu0
    %952 = vmatpush.bf16.msra.mxu0 %v877
    %953 = vmatpush.bf16.msra.mxu0 %v875
    %954 = vmatpush.bf16.msra.mxu0 %v873
    %955 = vmatpush.bf16.msra.mxu0 %v871
    %956 = vmatpush.bf16.msra.mxu0 %v869
    %957 = vmatpush.bf16.msra.mxu0 %v867
    %958 = vmatpush.bf16.msra.mxu0 %v865
    %959 = vmatpush.bf16.msra.mxu0 %v863
    %960 = vmatmul.bf16.gmra.mxu0 %v726
    %v961 = vpop.f32.mrf.mxu0
    %v962 = vadd.f32 %v763, %v961
    %v963 = vpop.f32.mrf.mxu0
    %964 = vdwg.mxu0
    %965 = vmatpush.bf16.msra.mxu0 %v893
    %966 = vmatpush.bf16.msra.mxu0 %v891
    %967 = vmatpush.bf16.msra.mxu0 %v889
    %968 = vmatpush.bf16.msra.mxu0 %v887
    %969 = vmatpush.bf16.msra.mxu0 %v885
    %970 = vmatpush.bf16.msra.mxu0 %v883
    %971 = vmatpush.bf16.msra.mxu0 %v881
    %972 = vmatpush.bf16.msra.mxu0 %v879
    %973 = vmatmul.bf16.gmra.mxu0 %v727
    %v974 = vpop.f32.mrf.mxu0
    %v975 = vadd.f32 %v962, %v974
    %v976 = vpop.f32.mrf.mxu0
    %977 = vdwg.mxu0
    %v978 = vpack.c.bf16 %v975, %v949
    %v979 = vunpack.c.l.bf16 %v978
    %v980 = vunpack.c.h.bf16 %v978
    %v981 = vmax.f32 %v979, 0.0
    %v982 = vmax.f32 %v980, 0.0
    %v983 = vpack.c.bf16 %v981, %v981
    %v984 = vpack.c.bf16 %v982, %v982
    %v985 = vld [vmem:[#allocation13] sm:$0xf]
    %v986 = vld [vmem:[#allocation13 + $0x4] sm:$0xf]
    %v987 = vld [vmem:[#allocation13 + $0x8] sm:$0xf]
    %v988 = vld [vmem:[#allocation13 + $0xc] sm:$0xf]
    %v989 = vld [vmem:[#allocation13 + $0x10] sm:$0xf]
    %v990 = vld [vmem:[#allocation13 + $0x14] sm:$0xf]
    %v991 = vld [vmem:[#allocation13 + $0x18] sm:$0xf]
    %v992 = vld [vmem:[#allocation13 + $0x1c] sm:$0xf]
    %v993 = vld [vmem:[#allocation13 + $0x20] sm:$0xf]
    %v994 = vld [vmem:[#allocation13 + $0x24] sm:$0xf]
    %v995 = vld [vmem:[#allocation13 + $0x28] sm:$0xf]
    %v996 = vld [vmem:[#allocation13 + $0x2c] sm:$0xf]
    %v997 = vld [vmem:[#allocation13 + $0x30] sm:$0xf]
    %v998 = vld [vmem:[#allocation13 + $0x34] sm:$0xf]
    %v999 = vld [vmem:[#allocation13 + $0x38] sm:$0xf]
    %v1000 = vld [vmem:[#allocation13 + $0x3c] sm:$0xf]
    %v1001 = vld [vmem:[#allocation13 + $0x40] sm:$0xf]
    %v1002 = vld [vmem:[#allocation13 + $0x44] sm:$0xf]
    %v1003 = vld [vmem:[#allocation13 + $0x48] sm:$0xf]
    %v1004 = vld [vmem:[#allocation13 + $0x4c] sm:$0xf]
    %v1005 = vld [vmem:[#allocation13 + $0x50] sm:$0xf]
    %v1006 = vld [vmem:[#allocation13 + $0x54] sm:$0xf]
    %v1007 = vld [vmem:[#allocation13 + $0x58] sm:$0xf]
    %v1008 = vld [vmem:[#allocation13 + $0x5c] sm:$0xf]
    %v1009 = vld [vmem:[#allocation13 + $0x60] sm:$0xf]
    %v1010 = vld [vmem:[#allocation13 + $0x64] sm:$0xf]
    %v1011 = vld [vmem:[#allocation13 + $0x68] sm:$0xf]
    %v1012 = vld [vmem:[#allocation13 + $0x6c] sm:$0xf]
    %v1013 = vld [vmem:[#allocation13 + $0x70] sm:$0xf]
    %v1014 = vld [vmem:[#allocation13 + $0x74] sm:$0xf]
    %v1015 = vld [vmem:[#allocation13 + $0x78] sm:$0xf]
    %v1016 = vld [vmem:[#allocation13 + $0x7c] sm:$0xf]
    %v1017 = vld [vmem:[%s10] sm:$0x1]
    %v1019 = vperm.slane %v1017, 0
    %v1053 = vunpack.c.l.b16 %v985
    %v1054 = vunpack.c.l.b16 %v986
    %v1055 = vunpack.c.l.b16 %v987
    %v1056 = vunpack.c.l.b16 %v988
    %v1057 = vunpack.c.l.b16 %v989
    %v1058 = vunpack.c.l.b16 %v990
    %v1059 = vunpack.c.l.b16 %v991
    %v1060 = vunpack.c.l.b16 %v992
    %v1061 = vunpack.c.l.b16 %v993
    %v1062 = vunpack.c.l.b16 %v994
    %v1063 = vunpack.c.l.b16 %v995
    %v1064 = vunpack.c.l.b16 %v996
    %v1065 = vunpack.c.l.b16 %v997
    %v1066 = vunpack.c.l.b16 %v998
    %v1067 = vunpack.c.l.b16 %v999
    %v1068 = vunpack.c.l.b16 %v1000
    %v1069 = vunpack.c.l.b16 %v1001
    %v1070 = vunpack.c.l.b16 %v1002
    %v1071 = vunpack.c.l.b16 %v1003
    %v1072 = vunpack.c.l.b16 %v1004
    %v1073 = vunpack.c.l.b16 %v1005
    %v1074 = vunpack.c.l.b16 %v1006
    %v1075 = vunpack.c.l.b16 %v1007
    %v1076 = vunpack.c.l.b16 %v1008
    %v1077 = vunpack.c.l.b16 %v1009
    %v1078 = vunpack.c.l.b16 %v1010
    %v1079 = vunpack.c.l.b16 %v1011
    %v1080 = vunpack.c.l.b16 %v1012
    %v1081 = vunpack.c.l.b16 %v1013
    %v1082 = vunpack.c.l.b16 %v1014
    %v1083 = vunpack.c.l.b16 %v1015
    %v1084 = vunpack.c.l.b16 %v1016
    %v1085 = vpack.c.b16 %v1054, %v1053
    %v1086 = vpack.c.b16 %v1056, %v1055
    %v1087 = vpack.c.b16 %v1058, %v1057
    %v1088 = vpack.c.b16 %v1060, %v1059
    %v1089 = vpack.c.b16 %v1062, %v1061
    %v1090 = vpack.c.b16 %v1064, %v1063
    %v1091 = vpack.c.b16 %v1066, %v1065
    %v1092 = vpack.c.b16 %v1068, %v1067
    %v1093 = vpack.c.b16 %v1070, %v1069
    %v1094 = vpack.c.b16 %v1072, %v1071
    %v1095 = vpack.c.b16 %v1074, %v1073
    %v1096 = vpack.c.b16 %v1076, %v1075
    %v1097 = vpack.c.b16 %v1078, %v1077
    %v1098 = vpack.c.b16 %v1080, %v1079
    %v1099 = vpack.c.b16 %v1082, %v1081
    %v1100 = vpack.c.b16 %v1084, %v1083
    %1117 = vmatpush.bf16.msra.mxu0 %v1092
    %1118 = vmatpush.bf16.msra.mxu0 %v1091
    %1119 = vmatpush.bf16.msra.mxu0 %v1090
    %1120 = vmatpush.bf16.msra.mxu0 %v1089
    %1121 = vmatpush.bf16.msra.mxu0 %v1088
    %1122 = vmatpush.bf16.msra.mxu0 %v1087
    %1123 = vmatpush.bf16.msra.mxu0 %v1086
    %1124 = vmatpush.bf16.msra.mxu0 %v1085
    %1125 = vmatmul.bf16.gmra.mxu0 %v983
    %v1126 = vpop.f32.mrf.mxu0
    %v1127 = vadd.f32 %v1019, %v1126
    %v1128 = vpop.f32.mrf.mxu0
    %1129 = vdwg.mxu0
    %1130 = vmatpush.bf16.msra.mxu0 %v1100
    %1131 = vmatpush.bf16.msra.mxu0 %v1099
    %1132 = vmatpush.bf16.msra.mxu0 %v1098
    %1133 = vmatpush.bf16.msra.mxu0 %v1097
    %1134 = vmatpush.bf16.msra.mxu0 %v1096
    %1135 = vmatpush.bf16.msra.mxu0 %v1095
    %1136 = vmatpush.bf16.msra.mxu0 %v1094
    %1137 = vmatpush.bf16.msra.mxu0 %v1093
    %1138 = vmatmul.bf16.gmra.mxu0 %v984
    %v1139 = vpop.f32.mrf.mxu0
    %v1140 = vadd.f32 %v1127, %v1139
    %v1141 = vpop.f32.mrf.mxu0
    %1142 = vdwg.mxu0
    %v1143 = vpack.c.bf16 %v1140, %v1140
    %1144 = vst [vmem:[#allocation14] sm:$0xf] %v1143
    // Predicated region
    $region74: #{tpu_custom_call.1} parent=1 // pred_check
      _
    $region75: #{tpu_custom_call.1} parent=1 // pred_check_branch
      %1146 = sbr.rel (0) target = $region77
    $region76: #{tpu_custom_call.1} parent=1 // pred_region
      %1148 = vsyncadd [#allocation4], 0
      %s1150 = sshll.u32 [#allocation14], 4
      %s1151 = int_to_ptr.vmem [resolvable:$true] %s1150
      %s1152 = sshll.u32 %s11, 4
      %s1153 = int_to_ptr.hbm [resolvable:$true] %s1152
      %1155 = dma.vmem_to_hbm [thread:$0]  %s1151, 64, %s1153, [#allocation4]
    $region77: #{tpu_custom_call.1} parent=1 // pred_fallthru
      _
    // Predicated region
    $region78: #{tpu_custom_call.1} parent=1 // pred_check
      _
    $region79: #{tpu_custom_call.1} parent=1 // pred_check_branch
      %1157 = sbr.rel (0) target = $region81
    $region80: #{tpu_custom_call.1} parent=1 // pred_region
      %1159 = dma.done [#allocation4], 64
    $region81: #{tpu_custom_call.1} parent=1 // pred_fallthru
      _
    %1160 = vsyncpa [#allocation3], 1
    %1161 = vsyncpa [#allocation6], 1
    %1162 = vsyncpa [#allocation9], 1
    %1163 = vsyncpa [#allocation12], 1
    %1164 = vsyncpa [#allocation4], 1

</llo_original>
